<compile_context>
chip_gen: v5e
topology: v5e:2x2
jax: 0.10.0
libtpu: 0.0.40
codegen_flags: <defaults>
</compile_context>

<pallas_src>
import math
from functools import partial

import jax
import jax.numpy as jnp
from jax import lax
from jax.experimental import pallas as pl
from jax.experimental.pallas import tpu as pltpu

_MIB = 1024 * 1024


# ---------------------------------------------------------------------------
# Kernel 1: fused Q/K/V projections — runs once per (batch, sequence tile).
# ---------------------------------------------------------------------------
def qkv_projection_kernel(q_ref, k_ref, v_ref,
                          wq_ref, bq_ref, wk_ref, bk_ref, wv_ref, bv_ref,
                          qp_ref, kp_ref, vp_ref, *, inv_scale):
    f32 = jnp.float32
    # Inputs and weights are already in compute_dtype (pre-cast on host); accumulate in f32.
    Q = jnp.dot(q_ref[0], wq_ref[...], preferred_element_type=f32) + bq_ref[0]
    K = jnp.dot(k_ref[0], wk_ref[...], preferred_element_type=f32) + bk_ref[0]
    V = jnp.dot(v_ref[0], wv_ref[...], preferred_element_type=f32) + bv_ref[0]
    qp_ref[0] = (Q * inv_scale).astype(qp_ref.dtype)   # fold softmax scale into Q once
    kp_ref[0] = K.astype(kp_ref.dtype)
    vp_ref[0] = V.astype(vp_ref.dtype)


# ---------------------------------------------------------------------------
# Kernel 2: attention + output projection for one (batch, query-tile) block.
# ---------------------------------------------------------------------------
def attention_kernel(qp_ref, kp_ref, vp_ref, wo_ref, bo_ref,
                     out_ref, attn_ref,
                     *, n_heads, head_dim, compute_dtype, exact_softmax_divide):
    f32 = jnp.float32
    Q = qp_ref[0]      # (tq, H) compute_dtype, already scaled by 1/sqrt(head_dim)
    K = kp_ref[0]      # (S,  H) projected keys
    V = vp_ref[0]      # (S,  H) projected values

    out_acc = None
    for h in range(n_heads):                          # static unroll over heads
        lo = h * head_dim
        Qh = Q[:, lo:lo + head_dim]                   # (tq, hd) lane-contiguous slices
        Kh = K[:, lo:lo + head_dim]                   # (S,  hd)
        Vh = V[:, lo:lo + head_dim]                   # (S,  hd)

        # energy = Qh @ Kh^T : contract dim 1 of both operands (same contraction as the
        # canonical flash-attention einsum) -> MXU transposed-operand path, no per-head
        # materialized transpose.
        energy = lax.dot_general(Qh, Kh, (((1,), (1,)), ((), ())),
                                 preferred_element_type=f32)           # (tq, S) f32

        # Numerically-safe softmax over keys; math kept in f32 (required on v5e).
        m = jnp.max(energy, axis=-1, keepdims=True)
        e = jnp.exp(energy - m)
        denom = jnp.sum(e, axis=-1, keepdims=True)
        if exact_softmax_divide:
            p = e / denom                                              # exact-parity path
        else:
            p = e * pl.reciprocal(denom, approx=True)                  # EUP slot, ~free

        attn_ref[0, h] = p.astype(attn_ref.dtype)

        # ctx_h = p @ Vh, immediately folded into the output projection:
        #   out += ctx_h @ Wo[lo:lo+hd, :]
        # -> no head concat, no XLU lane relayout, no all-heads ctx live set.
        ctx_h = jnp.dot(p.astype(compute_dtype), Vh, preferred_element_type=f32)
        contrib = jnp.dot(ctx_h.astype(compute_dtype), wo_ref[lo:lo + head_dim, :],
                          preferred_element_type=f32)                  # (tq, H) f32
        out_acc = contrib if out_acc is None else out_acc + contrib

    out_ref[0] = (out_acc + bo_ref[0]).astype(out_ref.dtype)


# ---------------------------------------------------------------------------
# Generation-aware tiling / VMEM budgeting.
# ---------------------------------------------------------------------------
def _vmem_capacity_bytes():
    """Physical VMEM of this generation (v5e/v6e: 128 MiB, v7x: 64 MiB per TensorCore)."""
    try:
        cap = int(pltpu.get_tpu_info().vmem_capacity_bytes)
        if cap > 0:
            return cap
    except Exception:
        pass
    return 64 * _MIB   # conservative fallback (v7x per-TC VMEM)


def _proj_vmem_bytes(s_tile, H, cb, wbuf):
    est = 3 * 2 * s_tile * H * cb            # q/k/v input tiles (double-buffered)
    est += 3 * 2 * s_tile * H * cb           # projected Q/K/V output tiles
    est += 3 * wbuf * (H * H * cb + H * 4)   # weights + biases
    est += 3 * s_tile * H * 4                # f32 accumulators before the store cast
    return int(est * 1.15) + 1 * _MIB


def _attn_vmem_bytes(q_tile, S, H, n_heads, cb, ab, wbuf):
    est = 2 * q_tile * H * cb                # projected Q tile
    est += 2 * 2 * S * H * cb                # full-sequence projected K and V
    est += wbuf * (H * H * cb + H * 4)       # fc_o weight / bias
    est += 2 * q_tile * H * 4                # x output block
    est += 2 * n_heads * q_tile * S * ab     # attention output block (dominant at large S)
    est += 4 * q_tile * S * 4 + 2 * q_tile * H * 4   # f32 softmax working set + out acc
    return int(est * 1.15) + 1 * _MIB


def _pick_tile(S, fits):
    """Largest sequence tile that fits the VMEM budget (full S when S is small)."""
    if S <= 256:
        return S
    cands = [t for t in (1024, 512, 256, 128) if S % t == 0]
    if not cands:
        # TODO(synk): pad irregular large S up to a multiple of 128 instead of full-S blocks.
        return S
    for t in cands:
        if fits(t):
            return t
    return cands[-1]


# ---------------------------------------------------------------------------
# Wrapper
# ---------------------------------------------------------------------------
def multi_head_attention(query, key, value, params, *, n_heads,
                         compute_dtype=jnp.float32, attn_dtype=jnp.float32,
                         exact_softmax_divide=False, q_tile=None, s_tile=None):
    """query/key/value: (B, S, H) float32.  params: PyTorch-layout fc_{q,k,v,o} weights/biases.
    Returns (x, attention) exactly as the PyTorch module (mask=None, eval-mode dropout)."""
    B, S, H = query.shape
    assert H % n_heads == 0
    head_dim = H // n_heads
    cb = jnp.dtype(compute_dtype).itemsize
    ab = jnp.dtype(attn_dtype).itemsize

    capacity = _vmem_capacity_bytes()
    budget = int(capacity * 0.85)

    # Host-side layout plumbing, done ONCE: nn.Linear stores W as (out, in); pass W.T = (in, out)
    # pre-cast to compute_dtype so kernels never transpose or cast weights per grid step.
    wq = params["wq"].T.astype(compute_dtype)
    wk = params["wk"].T.astype(compute_dtype)
    wv = params["wv"].T.astype(compute_dtype)
    wo = params["wo"].T.astype(compute_dtype)
    bq = params["bq"].reshape(1, H).astype(jnp.float32)
    bk = params["bk"].reshape(1, H).astype(jnp.float32)
    bv = params["bv"].reshape(1, H).astype(jnp.float32)
    bo = params["bo"].reshape(1, H).astype(jnp.float32)
    q_in = query.astype(compute_dtype)
    k_in = key.astype(compute_dtype)
    v_in = value.astype(compute_dtype)

    if s_tile is None:
        s_tile = _pick_tile(S, lambda t: _proj_vmem_bytes(t, H, cb, 1) <= budget)
    if S % s_tile:
        s_tile = S
    if q_tile is None:
        q_tile = _pick_tile(S, lambda t: _attn_vmem_bytes(t, S, H, n_heads, cb, ab, 1) <= budget)
    if S % q_tile:
        q_tile = S

    inv_scale = float(1.0 / math.sqrt(head_dim))

    def _run(single_buffer_consts):
        wbuf = 1 if single_buffer_consts else 2
        if single_buffer_consts:
            # Constant blocks (index_map always (0, 0)): single-buffer to halve weight VMEM.
            def const_spec(shape):
                return pl.BlockSpec(shape, lambda b, i: (0,) * len(shape),
                                    pipeline_mode=pl.Buffered(1))
        else:
            def const_spec(shape):
                return pl.BlockSpec(shape, lambda b, i: (0,) * len(shape))

        w_spec = const_spec((H, H))
        b_spec = const_spec((1, H))
        seq_spec = pl.BlockSpec((1, s_tile, H), lambda b, si: (b, si, 0))
        qtile_spec = pl.BlockSpec((1, q_tile, H), lambda b, qi: (b, qi, 0))
        kvfull_spec = pl.BlockSpec((1, S, H), lambda b, qi: (b, 0, 0))

        proj_vmem = int(min(0.9 * capacity,
                            max(_proj_vmem_bytes(s_tile, H, cb, wbuf), 16 * _MIB)))
        attn_vmem = int(min(0.9 * capacity,
                            max(_attn_vmem_bytes(q_tile, S, H, n_heads, cb, ab, wbuf),
                                16 * _MIB)))

        # --- pass 1: project Q/K/V once (no per-query-tile recomputation) ---------------
        qp, kp, vp = pl.pallas_call(
            partial(qkv_projection_kernel, inv_scale=inv_scale),
            out_shape=(jax.ShapeDtypeStruct((B, S, H), compute_dtype),) * 3,
            grid_spec=pltpu.PrefetchScalarGridSpec(
                num_scalar_prefetch=0,
                grid=(B, S // s_tile),
                in_specs=[seq_spec, seq_spec, seq_spec,
                          w_spec, b_spec, w_spec, b_spec, w_spec, b_spec],
                out_specs=[seq_spec, seq_spec, seq_spec],
            ),
            compiler_params=pltpu.CompilerParams(
                dimension_semantics=("parallel", "parallel"),
                vmem_limit_bytes=proj_vmem),
        )(q_in, k_in, v_in, wq, bq, wk, bk, wv, bv)

        # --- pass 2: attention + fc_o per (batch, query tile) ---------------------------
        x, attn = pl.pallas_call(
            partial(attention_kernel, n_heads=n_heads, head_dim=head_dim,
                    compute_dtype=compute_dtype,
                    exact_softmax_divide=exact_softmax_divide),
            out_shape=(
                jax.ShapeDtypeStruct((B, S, H), jnp.float32),
                jax.ShapeDtypeStruct((B, n_heads, S, S), attn_dtype),
            ),
            grid_spec=pltpu.PrefetchScalarGridSpec(
                num_scalar_prefetch=0,
                grid=(B, S // q_tile),
                in_specs=[qtile_spec, kvfull_spec, kvfull_spec, w_spec, b_spec],
                out_specs=[
                    pl.BlockSpec((1, q_tile, H), lambda b, qi: (b, qi, 0)),
                    pl.BlockSpec((1, n_heads, q_tile, S), lambda b, qi: (b, 0, qi, 0)),
                ],
            ),
            compiler_params=pltpu.CompilerParams(
                dimension_semantics=("parallel", "parallel"),
                vmem_limit_bytes=attn_vmem),
        )(qp, kp, vp, wo, bo)
        return x, attn

    try:
        return _run(single_buffer_consts=True)
    except Exception:
        # pipeline_mode=pl.Buffered(1) not supported on this jax build -> default buffering.
        return _run(single_buffer_consts=False)


# ---------------------------------------------------------------------------
# Pure-JAX reference reproducing the PyTorch forward (mask=None, eval mode).
# ---------------------------------------------------------------------------
def reference_mha(query, key, value, params, *, n_heads):
    B, S, H = query.shape
    hd = H // n_heads
    lin = lambda x, w, b: x @ w.T + b
    Q = lin(query, params["wq"], params["bq"]).reshape(B, S, n_heads, hd).transpose(0, 2, 1, 3)
    K = lin(key,   params["wk"], params["bk"]).reshape(B, S, n_heads, hd).transpose(0, 2, 1, 3)
    V = lin(value, params["wv"], params["bv"]).reshape(B, S, n_heads, hd).transpose(0, 2, 1, 3)
    energy = jnp.einsum('bhqd,bhkd->bhqk', Q, K) / jnp.sqrt(jnp.float32(hd))
    attn = jax.nn.softmax(energy, axis=-1)
    x = jnp.einsum('bhqk,bhkd->bhqd', attn, V).transpose(0, 2, 1, 3).reshape(B, S, H)
    x = lin(x, params["wo"], params["bo"])
    return x, attn


if __name__ == "__main__":
    B, S, H, n_heads = 2, 8, 32, 4

    root = jax.random.PRNGKey(0)
    keys = jax.random.split(root, 12)
    bound = 1.0 / math.sqrt(H)  # matches nn.Linear default init range

    params = {
        "wq": jax.random.uniform(keys[0], (H, H), jnp.float32, -bound, bound),
        "bq": jax.random.uniform(keys[1], (H,),   jnp.float32, -bound, bound),
        "wk": jax.random.uniform(keys[2], (H, H), jnp.float32, -bound, bound),
        "bk": jax.random.uniform(keys[3], (H,),   jnp.float32, -bound, bound),
        "wv": jax.random.uniform(keys[4], (H, H), jnp.float32, -bound, bound),
        "bv": jax.random.uniform(keys[5], (H,),   jnp.float32, -bound, bound),
        "wo": jax.random.uniform(keys[6], (H, H), jnp.float32, -bound, bound),
        "bo": jax.random.uniform(keys[7], (H,),   jnp.float32, -bound, bound),
    }

    query = jax.random.normal(keys[8],  (B, S, H), jnp.float32)
    key_in = jax.random.normal(keys[9], (B, S, H), jnp.float32)
    value = jax.random.normal(keys[10], (B, S, H), jnp.float32)

    x_want, attn_want = reference_mha(query, key_in, value, params, n_heads=n_heads)

    # f32 parity path: f32 MXU inputs, exact softmax divide.
    x, attn = multi_head_attention(query, key_in, value, params, n_heads=n_heads,
                                   compute_dtype=jnp.float32, attn_dtype=jnp.float32,
                                   exact_softmax_divide=True)
    x = jax.block_until_ready(x)
    attn = jax.block_until_ready(attn)
    assert x.shape == (B, S, H) and attn.shape == (B, n_heads, S, S)
    assert jnp.allclose(x, x_want, atol=1e-2, rtol=1e-2)
    assert jnp.allclose(attn, attn_want, atol=5e-3, rtol=5e-3)

    # bf16 perf path: bf16 MXU inputs, bf16 projected intermediates, bf16 attention writeback,
    # f32 accumulation and f32 softmax, EUP approximate reciprocal.
    xb, attnb = multi_head_attention(query, key_in, value, params, n_heads=n_heads,
                                     compute_dtype=jnp.bfloat16, attn_dtype=jnp.bfloat16)
    xb = jax.block_until_ready(xb)
    attnb = jax.block_until_ready(attnb)
    assert jnp.allclose(xb, x_want, atol=5e-2, rtol=5e-2)
    assert jnp.allclose(attnb.astype(jnp.float32), attn_want, atol=2e-2, rtol=2e-2)

    print("KERNEL_OK")
</pallas_src>

<mosaic_0001>
module attributes {stable_mosaic.version = 11 : i64} {
  func.func @qkv_projection_kernel(%arg0: i32, %arg1: i32, %arg2: memref<1x8x32xf32, #tpu.memory_space<vmem>>, %arg3: memref<1x8x32xf32, #tpu.memory_space<vmem>>, %arg4: memref<1x8x32xf32, #tpu.memory_space<vmem>>, %arg5: memref<32x32xf32, #tpu.memory_space<vmem>>, %arg6: memref<1x32xf32, #tpu.memory_space<vmem>>, %arg7: memref<32x32xf32, #tpu.memory_space<vmem>>, %arg8: memref<1x32xf32, #tpu.memory_space<vmem>>, %arg9: memref<32x32xf32, #tpu.memory_space<vmem>>, %arg10: memref<1x32xf32, #tpu.memory_space<vmem>>, %arg11: memref<1x8x32xf32, #tpu.memory_space<vmem>>, %arg12: memref<1x8x32xf32, #tpu.memory_space<vmem>>, %arg13: memref<1x8x32xf32, #tpu.memory_space<vmem>>) attributes {dimension_semantics = [#tpu.dimension_semantics<parallel>, #tpu.dimension_semantics<parallel>], iteration_bounds = array<i64: 2, 1>, scalar_prefetch = 0 : i64, scratch_operands = 0 : i64, tpu.core_type = #tpu.core_type<tc>, window_params = [{transform_indices = @transform_0, window_bounds = array<i64: 1, 8, 32>}, {transform_indices = @transform_1, window_bounds = array<i64: 1, 8, 32>}, {transform_indices = @transform_2, window_bounds = array<i64: 1, 8, 32>}, {pipeline_mode = #tpu.pipeline_mode<synchronous>, transform_indices = @transform_3, window_bounds = array<i64: 32, 32>}, {pipeline_mode = #tpu.pipeline_mode<synchronous>, transform_indices = @transform_4, window_bounds = array<i64: 1, 32>}, {pipeline_mode = #tpu.pipeline_mode<synchronous>, transform_indices = @transform_5, window_bounds = array<i64: 32, 32>}, {pipeline_mode = #tpu.pipeline_mode<synchronous>, transform_indices = @transform_6, window_bounds = array<i64: 1, 32>}, {pipeline_mode = #tpu.pipeline_mode<synchronous>, transform_indices = @transform_7, window_bounds = array<i64: 32, 32>}, {pipeline_mode = #tpu.pipeline_mode<synchronous>, transform_indices = @transform_8, window_bounds = array<i64: 1, 32>}, {transform_indices = @transform_9, window_bounds = array<i64: 1, 8, 32>}, {transform_indices = @transform_10, window_bounds = array<i64: 1, 8, 32>}, {transform_indices = @transform_11, window_bounds = array<i64: 1, 8, 32>}]} {
    %c0 = arith.constant 0 : index
    %c0_0 = arith.constant 0 : index
    %c0_1 = arith.constant 0 : index
    %0 = vector.load %arg2[%c0, %c0_0, %c0_1] : memref<1x8x32xf32, #tpu.memory_space<vmem>>, vector<1x8x32xf32>
    %1 = vector.shape_cast %0 : vector<1x8x32xf32> to vector<8x32xf32>
    %c0_2 = arith.constant 0 : index
    %c0_3 = arith.constant 0 : index
    %2 = vector.load %arg5[%c0_2, %c0_3] : memref<32x32xf32, #tpu.memory_space<vmem>>, vector<32x32xf32>
    %cst = arith.constant dense<0.000000e+00> : vector<8x32xf32>
    %3 = tpu.matmul %1, %2, %cst {dimension_numbers = #tpu.dot_dimension_numbers<[1], [0], [0], [1], [0, 0, 1, 1], [], []>} : vector<8x32xf32>, vector<32x32xf32>, vector<8x32xf32> -> vector<8x32xf32>
    %c0_4 = arith.constant 0 : index
    %c0_5 = arith.constant 0 : index
    %4 = vector.load %arg6[%c0_4, %c0_5] : memref<1x32xf32, #tpu.memory_space<vmem>>, vector<1x32xf32>
    %5 = vector.shape_cast %4 : vector<1x32xf32> to vector<32xf32>
    %6 = vector.shape_cast %5 : vector<32xf32> to vector<1x32xf32>
    %7 = vector.broadcast %6 : vector<1x32xf32> to vector<8x32xf32>
    %8 = arith.addf %3, %7 : vector<8x32xf32>
    %c0_6 = arith.constant 0 : index
    %c0_7 = arith.constant 0 : index
    %c0_8 = arith.constant 0 : index
    %9 = vector.load %arg3[%c0_6, %c0_7, %c0_8] : memref<1x8x32xf32, #tpu.memory_space<vmem>>, vector<1x8x32xf32>
    %10 = vector.shape_cast %9 : vector<1x8x32xf32> to vector<8x32xf32>
    %c0_9 = arith.constant 0 : index
    %c0_10 = arith.constant 0 : index
    %11 = vector.load %arg7[%c0_9, %c0_10] : memref<32x32xf32, #tpu.memory_space<vmem>>, vector<32x32xf32>
    %cst_11 = arith.constant dense<0.000000e+00> : vector<8x32xf32>
    %12 = tpu.matmul %10, %11, %cst_11 {dimension_numbers = #tpu.dot_dimension_numbers<[1], [0], [0], [1], [0, 0, 1, 1], [], []>} : vector<8x32xf32>, vector<32x32xf32>, vector<8x32xf32> -> vector<8x32xf32>
    %c0_12 = arith.constant 0 : index
    %c0_13 = arith.constant 0 : index
    %13 = vector.load %arg8[%c0_12, %c0_13] : memref<1x32xf32, #tpu.memory_space<vmem>>, vector<1x32xf32>
    %14 = vector.shape_cast %13 : vector<1x32xf32> to vector<32xf32>
    %15 = vector.shape_cast %14 : vector<32xf32> to vector<1x32xf32>
    %16 = vector.broadcast %15 : vector<1x32xf32> to vector<8x32xf32>
    %17 = arith.addf %12, %16 : vector<8x32xf32>
    %c0_14 = arith.constant 0 : index
    %c0_15 = arith.constant 0 : index
    %c0_16 = arith.constant 0 : index
    %18 = vector.load %arg4[%c0_14, %c0_15, %c0_16] : memref<1x8x32xf32, #tpu.memory_space<vmem>>, vector<1x8x32xf32>
    %19 = vector.shape_cast %18 : vector<1x8x32xf32> to vector<8x32xf32>
    %c0_17 = arith.constant 0 : index
    %c0_18 = arith.constant 0 : index
    %20 = vector.load %arg9[%c0_17, %c0_18] : memref<32x32xf32, #tpu.memory_space<vmem>>, vector<32x32xf32>
    %cst_19 = arith.constant dense<0.000000e+00> : vector<8x32xf32>
    %21 = tpu.matmul %19, %20, %cst_19 {dimension_numbers = #tpu.dot_dimension_numbers<[1], [0], [0], [1], [0, 0, 1, 1], [], []>} : vector<8x32xf32>, vector<32x32xf32>, vector<8x32xf32> -> vector<8x32xf32>
    %c0_20 = arith.constant 0 : index
    %c0_21 = arith.constant 0 : index
    %22 = vector.load %arg10[%c0_20, %c0_21] : memref<1x32xf32, #tpu.memory_space<vmem>>, vector<1x32xf32>
    %23 = vector.shape_cast %22 : vector<1x32xf32> to vector<32xf32>
    %24 = vector.shape_cast %23 : vector<32xf32> to vector<1x32xf32>
    %25 = vector.broadcast %24 : vector<1x32xf32> to vector<8x32xf32>
    %26 = arith.addf %21, %25 : vector<8x32xf32>
    %cst_22 = arith.constant 0.353553385 : f32
    %27 = vector.broadcast %cst_22 : f32 to vector<8x32xf32>
    %28 = arith.mulf %8, %27 : vector<8x32xf32>
    %c0_23 = arith.constant 0 : index
    %c0_24 = arith.constant 0 : index
    %c0_25 = arith.constant 0 : index
    %29 = vector.load %arg11[%c0_23, %c0_24, %c0_25] : memref<1x8x32xf32, #tpu.memory_space<vmem>>, vector<1x8x32xf32>
    %30 = vector.shape_cast %29 : vector<1x8x32xf32> to vector<8x32xf32>
    %31 = vector.shape_cast %28 : vector<8x32xf32> to vector<1x8x32xf32>
    tpu.vector_store %arg11[%c0_23, %c0_24, %c0_25], %31 {strides = array<i32>} : memref<1x8x32xf32, #tpu.memory_space<vmem>>, vector<1x8x32xf32>,
    %c0_26 = arith.constant 0 : index
    %c0_27 = arith.constant 0 : index
    %c0_28 = arith.constant 0 : index
    %32 = vector.load %arg12[%c0_26, %c0_27, %c0_28] : memref<1x8x32xf32, #tpu.memory_space<vmem>>, vector<1x8x32xf32>
    %33 = vector.shape_cast %32 : vector<1x8x32xf32> to vector<8x32xf32>
    %34 = vector.shape_cast %17 : vector<8x32xf32> to vector<1x8x32xf32>
    tpu.vector_store %arg12[%c0_26, %c0_27, %c0_28], %34 {strides = array<i32>} : memref<1x8x32xf32, #tpu.memory_space<vmem>>, vector<1x8x32xf32>,
    %c0_29 = arith.constant 0 : index
    %c0_30 = arith.constant 0 : index
    %c0_31 = arith.constant 0 : index
    %35 = vector.load %arg13[%c0_29, %c0_30, %c0_31] : memref<1x8x32xf32, #tpu.memory_space<vmem>>, vector<1x8x32xf32>
    %36 = vector.shape_cast %35 : vector<1x8x32xf32> to vector<8x32xf32>
    %37 = vector.shape_cast %26 : vector<8x32xf32> to vector<1x8x32xf32>
    tpu.vector_store %arg13[%c0_29, %c0_30, %c0_31], %37 {strides = array<i32>} : memref<1x8x32xf32, #tpu.memory_space<vmem>>, vector<1x8x32xf32>,
    return
  }
  func.func @transform_0(%arg0: i32, %arg1: i32) -> (i32, i32, i32) {
    %c0_i32 = arith.constant 0 : i32
    %c0_i32_0 = arith.constant 0 : i32
    return %arg0, %arg1, %c0_i32 : i32, i32, i32
  }
  func.func @transform_1(%arg0: i32, %arg1: i32) -> (i32, i32, i32) {
    %c0_i32 = arith.constant 0 : i32
    %c0_i32_0 = arith.constant 0 : i32
    return %arg0, %arg1, %c0_i32 : i32, i32, i32
  }
  func.func @transform_2(%arg0: i32, %arg1: i32) -> (i32, i32, i32) {
    %c0_i32 = arith.constant 0 : i32
    %c0_i32_0 = arith.constant 0 : i32
    return %arg0, %arg1, %c0_i32 : i32, i32, i32
  }
  func.func @transform_3(%arg0: i32, %arg1: i32) -> (i32, i32) {
    %c0_i32 = arith.constant 0 : i32
    %c0_i32_0 = arith.constant 0 : i32
    %c0_i32_1 = arith.constant 0 : i32
    return %c0_i32, %c0_i32_0 : i32, i32
  }
  func.func @transform_4(%arg0: i32, %arg1: i32) -> (i32, i32) {
    %c0_i32 = arith.constant 0 : i32
    %c0_i32_0 = arith.constant 0 : i32
    %c0_i32_1 = arith.constant 0 : i32
    return %c0_i32, %c0_i32_0 : i32, i32
  }
  func.func @transform_5(%arg0: i32, %arg1: i32) -> (i32, i32) {
    %c0_i32 = arith.constant 0 : i32
    %c0_i32_0 = arith.constant 0 : i32
    %c0_i32_1 = arith.constant 0 : i32
    return %c0_i32, %c0_i32_0 : i32, i32
  }
  func.func @transform_6(%arg0: i32, %arg1: i32) -> (i32, i32) {
    %c0_i32 = arith.constant 0 : i32
    %c0_i32_0 = arith.constant 0 : i32
    %c0_i32_1 = arith.constant 0 : i32
    return %c0_i32, %c0_i32_0 : i32, i32
  }
  func.func @transform_7(%arg0: i32, %arg1: i32) -> (i32, i32) {
    %c0_i32 = arith.constant 0 : i32
    %c0_i32_0 = arith.constant 0 : i32
    %c0_i32_1 = arith.constant 0 : i32
    return %c0_i32, %c0_i32_0 : i32, i32
  }
  func.func @transform_8(%arg0: i32, %arg1: i32) -> (i32, i32) {
    %c0_i32 = arith.constant 0 : i32
    %c0_i32_0 = arith.constant 0 : i32
    %c0_i32_1 = arith.constant 0 : i32
    return %c0_i32, %c0_i32_0 : i32, i32
  }
  func.func @transform_9(%arg0: i32, %arg1: i32) -> (i32, i32, i32) {
    %c0_i32 = arith.constant 0 : i32
    %c0_i32_0 = arith.constant 0 : i32
    return %arg0, %arg1, %c0_i32 : i32, i32, i32
  }
  func.func @transform_10(%arg0: i32, %arg1: i32) -> (i32, i32, i32) {
    %c0_i32 = arith.constant 0 : i32
    %c0_i32_0 = arith.constant 0 : i32
    return %arg0, %arg1, %c0_i32 : i32, i32, i32
  }
  func.func @transform_11(%arg0: i32, %arg1: i32) -> (i32, i32, i32) {
    %c0_i32 = arith.constant 0 : i32
    %c0_i32_0 = arith.constant 0 : i32
    return %arg0, %arg1, %c0_i32 : i32, i32, i32
  }
}

module attributes {stable_mosaic.version = 11 : i64} {
  func.func @qkv_projection_kernel(%arg0: i32, %arg1: i32, %arg2: memref<1x8x32xf32, #tpu.memory_space<vmem>>, %arg3: memref<1x8x32xf32, #tpu.memory_space<vmem>>, %arg4: memref<1x8x32xf32, #tpu.memory_space<vmem>>, %arg5: memref<32x32xf32, #tpu.memory_space<vmem>>, %arg6: memref<1x32xf32, #tpu.memory_space<vmem>>, %arg7: memref<32x32xf32, #tpu.memory_space<vmem>>, %arg8: memref<1x32xf32, #tpu.memory_space<vmem>>, %arg9: memref<32x32xf32, #tpu.memory_space<vmem>>, %arg10: memref<1x32xf32, #tpu.memory_space<vmem>>, %arg11: memref<1x8x32xf32, #tpu.memory_space<vmem>>, %arg12: memref<1x8x32xf32, #tpu.memory_space<vmem>>, %arg13: memref<1x8x32xf32, #tpu.memory_space<vmem>>) attributes {dimension_semantics = [#tpu.dimension_semantics<parallel>, #tpu.dimension_semantics<parallel>], iteration_bounds = array<i64: 2, 1>, scalar_prefetch = 0 : i64, scratch_operands = 0 : i64, tpu.core_type = #tpu.core_type<tc>, window_params = [{transform_indices = @transform_0, window_bounds = array<i64: 1, 8, 32>}, {transform_indices = @transform_1, window_bounds = array<i64: 1, 8, 32>}, {transform_indices = @transform_2, window_bounds = array<i64: 1, 8, 32>}, {pipeline_mode = #tpu.pipeline_mode<synchronous>, transform_indices = @transform_3, window_bounds = array<i64: 32, 32>}, {pipeline_mode = #tpu.pipeline_mode<synchronous>, transform_indices = @transform_4, window_bounds = array<i64: 1, 32>}, {pipeline_mode = #tpu.pipeline_mode<synchronous>, transform_indices = @transform_5, window_bounds = array<i64: 32, 32>}, {pipeline_mode = #tpu.pipeline_mode<synchronous>, transform_indices = @transform_6, window_bounds = array<i64: 1, 32>}, {pipeline_mode = #tpu.pipeline_mode<synchronous>, transform_indices = @transform_7, window_bounds = array<i64: 32, 32>}, {pipeline_mode = #tpu.pipeline_mode<synchronous>, transform_indices = @transform_8, window_bounds = array<i64: 1, 32>}, {transform_indices = @transform_9, window_bounds = array<i64: 1, 8, 32>}, {transform_indices = @transform_10, window_bounds = array<i64: 1, 8, 32>}, {transform_indices = @transform_11, window_bounds = array<i64: 1, 8, 32>}]} {
    %c0 = arith.constant 0 : index
    %c0_0 = arith.constant 0 : index
    %c0_1 = arith.constant 0 : index
    %0 = vector.load %arg2[%c0, %c0_0, %c0_1] : memref<1x8x32xf32, #tpu.memory_space<vmem>>, vector<1x8x32xf32>
    %1 = vector.shape_cast %0 : vector<1x8x32xf32> to vector<8x32xf32>
    %c0_2 = arith.constant 0 : index
    %c0_3 = arith.constant 0 : index
    %2 = vector.load %arg5[%c0_2, %c0_3] : memref<32x32xf32, #tpu.memory_space<vmem>>, vector<32x32xf32>
    %cst = arith.constant dense<0.000000e+00> : vector<8x32xf32>
    %3 = tpu.matmul %1, %2, %cst {dimension_numbers = #tpu.dot_dimension_numbers<[1], [0], [0], [1], [0, 0, 1, 1], [], []>} : vector<8x32xf32>, vector<32x32xf32>, vector<8x32xf32> -> vector<8x32xf32>
    %c0_4 = arith.constant 0 : index
    %c0_5 = arith.constant 0 : index
    %4 = vector.load %arg6[%c0_4, %c0_5] : memref<1x32xf32, #tpu.memory_space<vmem>>, vector<1x32xf32>
    %5 = vector.shape_cast %4 : vector<1x32xf32> to vector<32xf32>
    %6 = vector.shape_cast %5 : vector<32xf32> to vector<1x32xf32>
    %7 = vector.broadcast %6 : vector<1x32xf32> to vector<8x32xf32>
    %8 = arith.addf %3, %7 : vector<8x32xf32>
    %c0_6 = arith.constant 0 : index
    %c0_7 = arith.constant 0 : index
    %c0_8 = arith.constant 0 : index
    %9 = vector.load %arg3[%c0_6, %c0_7, %c0_8] : memref<1x8x32xf32, #tpu.memory_space<vmem>>, vector<1x8x32xf32>
    %10 = vector.shape_cast %9 : vector<1x8x32xf32> to vector<8x32xf32>
    %c0_9 = arith.constant 0 : index
    %c0_10 = arith.constant 0 : index
    %11 = vector.load %arg7[%c0_9, %c0_10] : memref<32x32xf32, #tpu.memory_space<vmem>>, vector<32x32xf32>
    %cst_11 = arith.constant dense<0.000000e+00> : vector<8x32xf32>
    %12 = tpu.matmul %10, %11, %cst_11 {dimension_numbers = #tpu.dot_dimension_numbers<[1], [0], [0], [1], [0, 0, 1, 1], [], []>} : vector<8x32xf32>, vector<32x32xf32>, vector<8x32xf32> -> vector<8x32xf32>
    %c0_12 = arith.constant 0 : index
    %c0_13 = arith.constant 0 : index
    %13 = vector.load %arg8[%c0_12, %c0_13] : memref<1x32xf32, #tpu.memory_space<vmem>>, vector<1x32xf32>
    %14 = vector.shape_cast %13 : vector<1x32xf32> to vector<32xf32>
    %15 = vector.shape_cast %14 : vector<32xf32> to vector<1x32xf32>
    %16 = vector.broadcast %15 : vector<1x32xf32> to vector<8x32xf32>
    %17 = arith.addf %12, %16 : vector<8x32xf32>
    %c0_14 = arith.constant 0 : index
    %c0_15 = arith.constant 0 : index
    %c0_16 = arith.constant 0 : index
    %18 = vector.load %arg4[%c0_14, %c0_15, %c0_16] : memref<1x8x32xf32, #tpu.memory_space<vmem>>, vector<1x8x32xf32>
    %19 = vector.shape_cast %18 : vector<1x8x32xf32> to vector<8x32xf32>
    %c0_17 = arith.constant 0 : index
    %c0_18 = arith.constant 0 : index
    %20 = vector.load %arg9[%c0_17, %c0_18] : memref<32x32xf32, #tpu.memory_space<vmem>>, vector<32x32xf32>
    %cst_19 = arith.constant dense<0.000000e+00> : vector<8x32xf32>
    %21 = tpu.matmul %19, %20, %cst_19 {dimension_numbers = #tpu.dot_dimension_numbers<[1], [0], [0], [1], [0, 0, 1, 1], [], []>} : vector<8x32xf32>, vector<32x32xf32>, vector<8x32xf32> -> vector<8x32xf32>
    %c0_20 = arith.constant 0 : index
    %c0_21 = arith.constant 0 : index
    %22 = vector.load %arg10[%c0_20, %c0_21] : memref<1x32xf32, #tpu.memory_space<vmem>>, vector<1x32xf32>
    %23 = vector.shape_cast %22 : vector<1x32xf32> to vector<32xf32>
    %24 = vector.shape_cast %23 : vector<32xf32> to vector<1x32xf32>
    %25 = vector.broadcast %24 : vector<1x32xf32> to vector<8x32xf32>
    %26 = arith.addf %21, %25 : vector<8x32xf32>
    %cst_22 = arith.constant 0.353553385 : f32
    %27 = vector.broadcast %cst_22 : f32 to vector<8x32xf32>
    %28 = arith.mulf %8, %27 : vector<8x32xf32>
    %c0_23 = arith.constant 0 : index
    %c0_24 = arith.constant 0 : index
    %c0_25 = arith.constant 0 : index
    %29 = vector.load %arg11[%c0_23, %c0_24, %c0_25] : memref<1x8x32xf32, #tpu.memory_space<vmem>>, vector<1x8x32xf32>
    %30 = vector.shape_cast %29 : vector<1x8x32xf32> to vector<8x32xf32>
    %31 = vector.shape_cast %28 : vector<8x32xf32> to vector<1x8x32xf32>
    tpu.vector_store %arg11[%c0_23, %c0_24, %c0_25], %31 {strides = array<i32>} : memref<1x8x32xf32, #tpu.memory_space<vmem>>, vector<1x8x32xf32>,
    %c0_26 = arith.constant 0 : index
    %c0_27 = arith.constant 0 : index
    %c0_28 = arith.constant 0 : index
    %32 = vector.load %arg12[%c0_26, %c0_27, %c0_28] : memref<1x8x32xf32, #tpu.memory_space<vmem>>, vector<1x8x32xf32>
    %33 = vector.shape_cast %32 : vector<1x8x32xf32> to vector<8x32xf32>
    %34 = vector.shape_cast %17 : vector<8x32xf32> to vector<1x8x32xf32>
    tpu.vector_store %arg12[%c0_26, %c0_27, %c0_28], %34 {strides = array<i32>} : memref<1x8x32xf32, #tpu.memory_space<vmem>>, vector<1x8x32xf32>,
    %c0_29 = arith.constant 0 : index
    %c0_30 = arith.constant 0 : index
    %c0_31 = arith.constant 0 : index
    %35 = vector.load %arg13[%c0_29, %c0_30, %c0_31] : memref<1x8x32xf32, #tpu.memory_space<vmem>>, vector<1x8x32xf32>
    %36 = vector.shape_cast %35 : vector<1x8x32xf32> to vector<8x32xf32>
    %37 = vector.shape_cast %26 : vector<8x32xf32> to vector<1x8x32xf32>
    tpu.vector_store %arg13[%c0_29, %c0_30, %c0_31], %37 {strides = array<i32>} : memref<1x8x32xf32, #tpu.memory_space<vmem>>, vector<1x8x32xf32>,
    return
  }
  func.func @transform_0(%arg0: i32, %arg1: i32) -> (i32, i32, i32) {
    %c0_i32 = arith.constant 0 : i32
    %c0_i32_0 = arith.constant 0 : i32
    return %arg0, %arg1, %c0_i32 : i32, i32, i32
  }
  func.func @transform_1(%arg0: i32, %arg1: i32) -> (i32, i32, i32) {
    %c0_i32 = arith.constant 0 : i32
    %c0_i32_0 = arith.constant 0 : i32
    return %arg0, %arg1, %c0_i32 : i32, i32, i32
  }
  func.func @transform_2(%arg0: i32, %arg1: i32) -> (i32, i32, i32) {
    %c0_i32 = arith.constant 0 : i32
    %c0_i32_0 = arith.constant 0 : i32
    return %arg0, %arg1, %c0_i32 : i32, i32, i32
  }
  func.func @transform_3(%arg0: i32, %arg1: i32) -> (i32, i32) {
    %c0_i32 = arith.constant 0 : i32
    %c0_i32_0 = arith.constant 0 : i32
    %c0_i32_1 = arith.constant 0 : i32
    return %c0_i32, %c0_i32_0 : i32, i32
  }
  func.func @transform_4(%arg0: i32, %arg1: i32) -> (i32, i32) {
    %c0_i32 = arith.constant 0 : i32
    %c0_i32_0 = arith.constant 0 : i32
    %c0_i32_1 = arith.constant 0 : i32
    return %c0_i32, %c0_i32_0 : i32, i32
  }
  func.func @transform_5(%arg0: i32, %arg1: i32) -> (i32, i32) {
    %c0_i32 = arith.constant 0 : i32
    %c0_i32_0 = arith.constant 0 : i32
    %c0_i32_1 = arith.constant 0 : i32
    return %c0_i32, %c0_i32_0 : i32, i32
  }
  func.func @transform_6(%arg0: i32, %arg1: i32) -> (i32, i32) {
    %c0_i32 = arith.constant 0 : i32
    %c0_i32_0 = arith.constant 0 : i32
    %c0_i32_1 = arith.constant 0 : i32
    return %c0_i32, %c0_i32_0 : i32, i32
  }
  func.func @transform_7(%arg0: i32, %arg1: i32) -> (i32, i32) {
    %c0_i32 = arith.constant 0 : i32
    %c0_i32_0 = arith.constant 0 : i32
    %c0_i32_1 = arith.constant 0 : i32
    return %c0_i32, %c0_i32_0 : i32, i32
  }
  func.func @transform_8(%arg0: i32, %arg1: i32) -> (i32, i32) {
    %c0_i32 = arith.constant 0 : i32
    %c0_i32_0 = arith.constant 0 : i32
    %c0_i32_1 = arith.constant 0 : i32
    return %c0_i32, %c0_i32_0 : i32, i32
  }
  func.func @transform_9(%arg0: i32, %arg1: i32) -> (i32, i32, i32) {
    %c0_i32 = arith.constant 0 : i32
    %c0_i32_0 = arith.constant 0 : i32
    return %arg0, %arg1, %c0_i32 : i32, i32, i32
  }
  func.func @transform_10(%arg0: i32, %arg1: i32) -> (i32, i32, i32) {
    %c0_i32 = arith.constant 0 : i32
    %c0_i32_0 = arith.constant 0 : i32
    return %arg0, %arg1, %c0_i32 : i32, i32, i32
  }
  func.func @transform_11(%arg0: i32, %arg1: i32) -> (i32, i32, i32) {
    %c0_i32 = arith.constant 0 : i32
    %c0_i32_0 = arith.constant 0 : i32
    return %arg0, %arg1, %c0_i32 : i32, i32, i32
  }
}

</mosaic_0001>

<llo_original>
// kernel: tpu_custom_call.1
$region0: #{tpu_custom_call.1}
  #allocation0 [shape = 'u32[]', space=smem, size = 0x4, offset = 0x4, fixed_abs, tag = 'smem constant byte address 0x4 - core index']
  #allocation1 [shape = 'u32[72,128]{1,0:T(1,128)}', space=vmem, size = 0x9000, scoped, tag = 'internal scratch']
  %s0 = inlined_call_operand.hbm [shape: f32[2,8,32], index: 0, kind: input, shape index: {}]
  %s1 = inlined_call_operand.hbm [shape: f32[2,8,32], index: 1, kind: input, shape index: {}]
  %s2 = inlined_call_operand.hbm [shape: f32[2,8,32], index: 2, kind: input, shape index: {}]
  %s3 = inlined_call_operand.hbm [shape: f32[32,32], index: 3, kind: input, shape index: {}]
  %s4 = inlined_call_operand.vmem [shape: f32[1,32], index: 4, kind: input, shape index: {}]
  %s5 = inlined_call_operand.hbm [shape: f32[32,32], index: 5, kind: input, shape index: {}]
  %s6 = inlined_call_operand.vmem [shape: f32[1,32], index: 6, kind: input, shape index: {}]
  %s7 = inlined_call_operand.hbm [shape: f32[32,32], index: 7, kind: input, shape index: {}]
  %s8 = inlined_call_operand.vmem [shape: f32[1,32], index: 8, kind: input, shape index: {}]
  %s9 = inlined_call_operand.hbm [shape: f32[2,8,32], index: 9, kind: output, shape index: {0}]
  %s10 = inlined_call_operand.hbm [shape: f32[2,8,32], index: 10, kind: output, shape index: {1}]
  %s11 = inlined_call_operand.hbm [shape: f32[2,8,32], index: 11, kind: output, shape index: {2}]
  %12 = xla_tuple %s9, %s10, %s11
  %s13 = sld [smem:[#allocation0]]
  $region109: #{tpu_custom_call.1} parent=0
    _
  %s15 = ssub.s32 1, %s13
  %s16 = scalar_select 0, %s15, %s13
  $region1: #{tpu_custom_call.1} parent=0
    #allocation2 [shape = 'u8[8192]{0}', space=vmem, size = 0x2000, scoped, tag = 'input window, operand 0']
    #allocation3 [shape = 's32[2]{0}', space=sflag, size = 0x8, scoped, tag = 'scoped memory for tpu_custom_call.1']
    #allocation4 [shape = 's32[2]{0}', space=sflag, size = 0x8, scoped, tag = 'scoped memory for tpu_custom_call.1']
    #allocation5 [shape = 'u8[8192]{0}', space=vmem, size = 0x2000, scoped, tag = 'input window, operand 1']
    #allocation6 [shape = 's32[2]{0}', space=sflag, size = 0x8, scoped, tag = 'scoped memory for tpu_custom_call.1']
    #allocation7 [shape = 'u8[8192]{0}', space=vmem, size = 0x2000, scoped, tag = 'input window, operand 2']
    #allocation8 [shape = 'u8[16384]{0}', space=vmem, size = 0x4000, scoped, tag = 'input window, operand 3, single buffered']
    #allocation9 [shape = 's32[1]{0}', space=sflag, size = 0x4, scoped, tag = 'scoped memory for tpu_custom_call.1']
    #allocation10 [shape = 'u8[16384]{0}', space=vmem, size = 0x4000, scoped, tag = 'input window, operand 5, single buffered']
    #allocation11 [shape = 'u8[16384]{0}', space=vmem, size = 0x4000, scoped, tag = 'input window, operand 7, single buffered']
    #allocation12 [shape = 's32[1]{0}', space=sflag, size = 0x4, scoped, tag = 'scoped memory for tpu_custom_call.1']
    #allocation13 [shape = 'u8[8192]{0}', space=vmem, size = 0x2000, scoped, tag = 'output window, operand 0']
    #allocation14 [shape = 'u8[8192]{0}', space=vmem, size = 0x2000, scoped, tag = 'output window, operand 1']
    #allocation15 [shape = 's32[2]{0}', space=sflag, size = 0x8, scoped, tag = 'scoped memory for tpu_custom_call.1']
    #allocation16 [shape = 'u8[8192]{0}', space=vmem, size = 0x2000, scoped, tag = 'output window, operand 2']
    %17 = vsyncpa [#allocation3], 0
    %s18 = scalar_lea.sflag [#allocation3], 1
    %19 = vsyncpa %s18, 0
    %20 = vsyncpa [#allocation6], 0
    %s21 = scalar_lea.sflag [#allocation6], 1
    %22 = vsyncpa %s21, 0
    %23 = vsyncpa [#allocation9], 0
    %24 = vsyncpa [#allocation12], 0
    %25 = vsyncpa [#allocation4], 0
    %s26 = scalar_lea.sflag [#allocation4], 1
    %27 = vsyncpa %s26, 0
    %28 = vsyncpa [#allocation15], 0
    %s29 = scalar_lea.sflag [#allocation15], 1
    %30 = vsyncpa %s29, 0
    loop: start=0, step=1, limit=4
    $region2: #{tpu_custom_call.1} parent=1 // loop_pre_header
      _
    $region3: #{tpu_custom_call.1} parent=1 // loop_header
      %s32 = sphi 0, %s36
      %p33 = scmp.ge.s32.totalorder %s32, 4
      %s39 = sphi 0, %s51
      %s40 = sphi 0, %s47
      %s41 = sphi 0, %s39
      %s42 = sphi 0, %s40
      %s43 = sphi 0, %s41
      %s44 = sphi 0, %s42
      %s56 = sphi 0, %s58
      %s59 = sphi 0, %s56
      %s60 = sphi 0, %s59
      %s76 = sphi 0, %s60
      %s84 = sphi 0, %s86
      %s87 = sphi 0, %s84
      %s88 = sphi 0, %s87
      %s104 = sphi 0, %s88
      %s112 = sphi 0, %s114
      %s115 = sphi 0, %s112
      %s116 = sphi 0, %s115
      %s132 = sphi 0, %s116
      %s136 = sphi 0, %s136
      %s138 = sphi 0, %s136
      %s139 = sphi 0, %s138
      %s153 = sphi 0, %s139
      %s157 = sphi 0, %s157
      %s159 = sphi 0, %s157
      %s160 = sphi 0, %s159
      %s174 = sphi 0, %s160
      %s178 = sphi 0, %s178
      %s180 = sphi 0, %s178
      %s181 = sphi 0, %s180
      %s195 = sphi 0, %s181
      %s199 = sphi 0, %s199
      %s201 = sphi 0, %s199
      %s202 = sphi 0, %s201
      %s216 = sphi 0, %s202
      %s220 = sphi 0, %s220
      %s222 = sphi 0, %s220
      %s223 = sphi 0, %s222
      %s237 = sphi 0, %s223
      %s241 = sphi 0, %s241
      %s243 = sphi 0, %s241
      %s244 = sphi 0, %s243
      %s258 = sphi 0, %s244
      %s266 = sphi 0, %s268
      %s269 = sphi 0, %s266
      %s270 = sphi 0, %s269
      %s286 = sphi 0, %s270
      %s294 = sphi 0, %s296
      %s297 = sphi 0, %s294
      %s298 = sphi 0, %s297
      %s314 = sphi 0, %s298
      %s322 = sphi 0, %s324
      %s325 = sphi 0, %s322
      %s326 = sphi 0, %s325
      %s342 = sphi 0, %s326
    $region4: #{tpu_custom_call.1} parent=1 // loop_header_branch
      %35 = sbr.rel (%p33) target = $region8
    $region5: #{tpu_custom_call.1} parent=1 // loop_body
      %s37 = ssub.s32 %s32, 1
      %s38 = ssub.s32 %s32, 2
      %s45 = sadd.s32 1, %s40
      %p46 = scmp.ge.s32.totalorder %s45, 1
      %s47 = scalar_select %p46, 0, %s45
      %s48 = sadd.s32 1, %s39
      %s49 = scalar_select %p46, %s48, %s39
      %p50 = scmp.ge.s32.totalorder %s49, 2
      %s51 = scalar_select %p50, 0, %s49
      %s52 = ssub.s32 %s39, %s51
      %s53 = ssub.s32 %s40, %s47
      %s54 = sor.u32 %s52, %s53
      %p55 = scmp.eq.s32.totalorder %s54, 0
      %s57 = sadd.s32 %s56, 1
      %s58 = scalar_select %p55, %s56, %s57
      %p61 = pneg %p55
      %p62 = scmp.eq.s32.totalorder %s32, 1
      %p63 = por %p61, %p62
      %p64 = scmp.ne.s32.totalorder %s56, %s59
      %p65 = scmp.eq.s32.totalorder %s32, 0
      %p66 = por %p64, %p65
      %p67 = scmp.ne.s32.totalorder %s56, %s59
      %p68 = scmp.eq.s32.totalorder %s37, 1
      %p69 = por %p67, %p68
      %p70 = scmp.ne.s32.totalorder %s59, %s60
      %p71 = scmp.eq.s32.totalorder %s37, 0
      %p72 = por %p70, %p71
      %p73 = scmp.ne.s32.totalorder %s59, %s60
      %p74 = scmp.eq.s32.totalorder %s38, 1
      %p75 = por %p73, %p74
      %p77 = scmp.ne.s32.totalorder %s60, %s76
      %p78 = scmp.eq.s32.totalorder %s38, 0
      %p79 = por %p77, %p78
      %s80 = ssub.s32 %s39, %s51
      %s81 = ssub.s32 %s40, %s47
      %s82 = sor.u32 %s80, %s81
      %p83 = scmp.eq.s32.totalorder %s82, 0
      %s85 = sadd.s32 %s84, 1
      %s86 = scalar_select %p83, %s84, %s85
      %p89 = pneg %p83
      %p90 = scmp.eq.s32.totalorder %s32, 1
      %p91 = por %p89, %p90
      %p92 = scmp.ne.s32.totalorder %s84, %s87
      %p93 = scmp.eq.s32.totalorder %s32, 0
      %p94 = por %p92, %p93
      %p95 = scmp.ne.s32.totalorder %s84, %s87
      %p96 = scmp.eq.s32.totalorder %s37, 1
      %p97 = por %p95, %p96
      %p98 = scmp.ne.s32.totalorder %s87, %s88
      %p99 = scmp.eq.s32.totalorder %s37, 0
      %p100 = por %p98, %p99
      %p101 = scmp.ne.s32.totalorder %s87, %s88
      %p102 = scmp.eq.s32.totalorder %s38, 1
      %p103 = por %p101, %p102
      %p105 = scmp.ne.s32.totalorder %s88, %s104
      %p106 = scmp.eq.s32.totalorder %s38, 0
      %p107 = por %p105, %p106
      %s108 = ssub.s32 %s39, %s51
      %s109 = ssub.s32 %s40, %s47
      %s110 = sor.u32 %s108, %s109
      %p111 = scmp.eq.s32.totalorder %s110, 0
      %s113 = sadd.s32 %s112, 1
      %s114 = scalar_select %p111, %s112, %s113
      %p117 = pneg %p111
      %p118 = scmp.eq.s32.totalorder %s32, 1
      %p119 = por %p117, %p118
      %p120 = scmp.ne.s32.totalorder %s112, %s115
      %p121 = scmp.eq.s32.totalorder %s32, 0
      %p122 = por %p120, %p121
      %p123 = scmp.ne.s32.totalorder %s112, %s115
      %p124 = scmp.eq.s32.totalorder %s37, 1
      %p125 = por %p123, %p124
      %p126 = scmp.ne.s32.totalorder %s115, %s116
      %p127 = scmp.eq.s32.totalorder %s37, 0
      %p128 = por %p126, %p127
      %p129 = scmp.ne.s32.totalorder %s115, %s116
      %p130 = scmp.eq.s32.totalorder %s38, 1
      %p131 = por %p129, %p130
      %p133 = scmp.ne.s32.totalorder %s116, %s132
      %p134 = scmp.eq.s32.totalorder %s38, 0
      %p135 = por %p133, %p134
      %s137 = sadd.s32 %s136, 1
      %p140 = scmp.eq.s32.totalorder %s32, 1
      %p141 = scmp.ne.s32.totalorder %s136, %s138
      %p142 = scmp.eq.s32.totalorder %s32, 0
      %p143 = por %p141, %p142
      %p144 = scmp.ne.s32.totalorder %s136, %s138
      %p145 = scmp.eq.s32.totalorder %s37, 1
      %p146 = por %p144, %p145
      %p147 = scmp.ne.s32.totalorder %s138, %s139
      %p148 = scmp.eq.s32.totalorder %s37, 0
      %p149 = por %p147, %p148
      %p150 = scmp.ne.s32.totalorder %s138, %s139
      %p151 = scmp.eq.s32.totalorder %s38, 1
      %p152 = por %p150, %p151
      %p154 = scmp.ne.s32.totalorder %s139, %s153
      %p155 = scmp.eq.s32.totalorder %s38, 0
      %p156 = por %p154, %p155
      %s158 = sadd.s32 %s157, 1
      %p161 = scmp.eq.s32.totalorder %s32, 1
      %p162 = scmp.ne.s32.totalorder %s157, %s159
      %p163 = scmp.eq.s32.totalorder %s32, 0
      %p164 = por %p162, %p163
      %p165 = scmp.ne.s32.totalorder %s157, %s159
      %p166 = scmp.eq.s32.totalorder %s37, 1
      %p167 = por %p165, %p166
      %p168 = scmp.ne.s32.totalorder %s159, %s160
      %p169 = scmp.eq.s32.totalorder %s37, 0
      %p170 = por %p168, %p169
      %p171 = scmp.ne.s32.totalorder %s159, %s160
      %p172 = scmp.eq.s32.totalorder %s38, 1
      %p173 = por %p171, %p172
      %p175 = scmp.ne.s32.totalorder %s160, %s174
      %p176 = scmp.eq.s32.totalorder %s38, 0
      %p177 = por %p175, %p176
      %s179 = sadd.s32 %s178, 1
      %p182 = scmp.eq.s32.totalorder %s32, 1
      %p183 = scmp.ne.s32.totalorder %s178, %s180
      %p184 = scmp.eq.s32.totalorder %s32, 0
      %p185 = por %p183, %p184
      %p186 = scmp.ne.s32.totalorder %s178, %s180
      %p187 = scmp.eq.s32.totalorder %s37, 1
      %p188 = por %p186, %p187
      %p189 = scmp.ne.s32.totalorder %s180, %s181
      %p190 = scmp.eq.s32.totalorder %s37, 0
      %p191 = por %p189, %p190
      %p192 = scmp.ne.s32.totalorder %s180, %s181
      %p193 = scmp.eq.s32.totalorder %s38, 1
      %p194 = por %p192, %p193
      %p196 = scmp.ne.s32.totalorder %s181, %s195
      %p197 = scmp.eq.s32.totalorder %s38, 0
      %p198 = por %p196, %p197
      %s200 = sadd.s32 %s199, 1
      %p203 = scmp.eq.s32.totalorder %s32, 1
      %p204 = scmp.ne.s32.totalorder %s199, %s201
      %p205 = scmp.eq.s32.totalorder %s32, 0
      %p206 = por %p204, %p205
      %p207 = scmp.ne.s32.totalorder %s199, %s201
      %p208 = scmp.eq.s32.totalorder %s37, 1
      %p209 = por %p207, %p208
      %p210 = scmp.ne.s32.totalorder %s201, %s202
      %p211 = scmp.eq.s32.totalorder %s37, 0
      %p212 = por %p210, %p211
      %p213 = scmp.ne.s32.totalorder %s201, %s202
      %p214 = scmp.eq.s32.totalorder %s38, 1
      %p215 = por %p213, %p214
      %p217 = scmp.ne.s32.totalorder %s202, %s216
      %p218 = scmp.eq.s32.totalorder %s38, 0
      %p219 = por %p217, %p218
      %s221 = sadd.s32 %s220, 1
      %p224 = scmp.eq.s32.totalorder %s32, 1
      %p225 = scmp.ne.s32.totalorder %s220, %s222
      %p226 = scmp.eq.s32.totalorder %s32, 0
      %p227 = por %p225, %p226
      %p228 = scmp.ne.s32.totalorder %s220, %s222
      %p229 = scmp.eq.s32.totalorder %s37, 1
      %p230 = por %p228, %p229
      %p231 = scmp.ne.s32.totalorder %s222, %s223
      %p232 = scmp.eq.s32.totalorder %s37, 0
      %p233 = por %p231, %p232
      %p234 = scmp.ne.s32.totalorder %s222, %s223
      %p235 = scmp.eq.s32.totalorder %s38, 1
      %p236 = por %p234, %p235
      %p238 = scmp.ne.s32.totalorder %s223, %s237
      %p239 = scmp.eq.s32.totalorder %s38, 0
      %p240 = por %p238, %p239
      %s242 = sadd.s32 %s241, 1
      %p245 = scmp.eq.s32.totalorder %s32, 1
      %p246 = scmp.ne.s32.totalorder %s241, %s243
      %p247 = scmp.eq.s32.totalorder %s32, 0
      %p248 = por %p246, %p247
      %p249 = scmp.ne.s32.totalorder %s241, %s243
      %p250 = scmp.eq.s32.totalorder %s37, 1
      %p251 = por %p249, %p250
      %p252 = scmp.ne.s32.totalorder %s243, %s244
      %p253 = scmp.eq.s32.totalorder %s37, 0
      %p254 = por %p252, %p253
      %p255 = scmp.ne.s32.totalorder %s243, %s244
      %p256 = scmp.eq.s32.totalorder %s38, 1
      %p257 = por %p255, %p256
      %p259 = scmp.ne.s32.totalorder %s244, %s258
      %p260 = scmp.eq.s32.totalorder %s38, 0
      %p261 = por %p259, %p260
      %s262 = ssub.s32 %s39, %s51
      %s263 = ssub.s32 %s40, %s47
      %s264 = sor.u32 %s262, %s263
      %p265 = scmp.eq.s32.totalorder %s264, 0
      %s267 = sadd.s32 %s266, 1
      %s268 = scalar_select %p265, %s266, %s267
      %p271 = pneg %p265
      %p272 = scmp.eq.s32.totalorder %s32, 1
      %p273 = por %p271, %p272
      %p274 = scmp.ne.s32.totalorder %s266, %s269
      %p275 = scmp.eq.s32.totalorder %s32, 0
      %p276 = por %p274, %p275
      %p277 = scmp.ne.s32.totalorder %s266, %s269
      %p278 = scmp.eq.s32.totalorder %s37, 1
      %p279 = por %p277, %p278
      %p280 = scmp.ne.s32.totalorder %s269, %s270
      %p281 = scmp.eq.s32.totalorder %s37, 0
      %p282 = por %p280, %p281
      %p283 = scmp.ne.s32.totalorder %s269, %s270
      %p284 = scmp.eq.s32.totalorder %s38, 1
      %p285 = por %p283, %p284
      %p287 = scmp.ne.s32.totalorder %s270, %s286
      %p288 = scmp.eq.s32.totalorder %s38, 0
      %p289 = por %p287, %p288
      %s290 = ssub.s32 %s39, %s51
      %s291 = ssub.s32 %s40, %s47
      %s292 = sor.u32 %s290, %s291
      %p293 = scmp.eq.s32.totalorder %s292, 0
      %s295 = sadd.s32 %s294, 1
      %s296 = scalar_select %p293, %s294, %s295
      %p299 = pneg %p293
      %p300 = scmp.eq.s32.totalorder %s32, 1
      %p301 = por %p299, %p300
      %p302 = scmp.ne.s32.totalorder %s294, %s297
      %p303 = scmp.eq.s32.totalorder %s32, 0
      %p304 = por %p302, %p303
      %p305 = scmp.ne.s32.totalorder %s294, %s297
      %p306 = scmp.eq.s32.totalorder %s37, 1
      %p307 = por %p305, %p306
      %p308 = scmp.ne.s32.totalorder %s297, %s298
      %p309 = scmp.eq.s32.totalorder %s37, 0
      %p310 = por %p308, %p309
      %p311 = scmp.ne.s32.totalorder %s297, %s298
      %p312 = scmp.eq.s32.totalorder %s38, 1
      %p313 = por %p311, %p312
      %p315 = scmp.ne.s32.totalorder %s298, %s314
      %p316 = scmp.eq.s32.totalorder %s38, 0
      %p317 = por %p315, %p316
      %s318 = ssub.s32 %s39, %s51
      %s319 = ssub.s32 %s40, %s47
      %s320 = sor.u32 %s318, %s319
      %p321 = scmp.eq.s32.totalorder %s320, 0
      %s323 = sadd.s32 %s322, 1
      %s324 = scalar_select %p321, %s322, %s323
      %p327 = pneg %p321
      %p328 = scmp.eq.s32.totalorder %s32, 1
      %p329 = por %p327, %p328
      %p330 = scmp.ne.s32.totalorder %s322, %s325
      %p331 = scmp.eq.s32.totalorder %s32, 0
      %p332 = por %p330, %p331
      %p333 = scmp.ne.s32.totalorder %s322, %s325
      %p334 = scmp.eq.s32.totalorder %s37, 1
      %p335 = por %p333, %p334
      %p336 = scmp.ne.s32.totalorder %s325, %s326
      %p337 = scmp.eq.s32.totalorder %s37, 0
      %p338 = por %p336, %p337
      %p339 = scmp.ne.s32.totalorder %s325, %s326
      %p340 = scmp.eq.s32.totalorder %s38, 1
      %p341 = por %p339, %p340
      %p343 = scmp.ne.s32.totalorder %s326, %s342
      %p344 = scmp.eq.s32.totalorder %s38, 0
      %p345 = por %p343, %p344
      %p346 = scmp.le.s32.totalorder 1, %s32
      %p347 = scmp.lt.s32.totalorder %s32, 3
      %p348 = pnand %p346, %p347
      %p349 = pneg %p348
      // Predicated region
      $region9: #{tpu_custom_call.1} parent=5 // pred_check
        _
      $region10: #{tpu_custom_call.1} parent=5 // pred_check_branch
        %351 = sbr.rel (%p348) target = $region12
      $region11: #{tpu_custom_call.1} parent=5 // pred_region
        %s352 = ssub.s32 %s32, 1
        // Predicated region
        $region13: #{tpu_custom_call.1} parent=11 // pred_check
          %p353 = pneg %p149
        $region14: #{tpu_custom_call.1} parent=11 // pred_check_branch
          %355 = sbr.rel (%p353) target = $region16
        $region15: #{tpu_custom_call.1} parent=11 // pred_region
          %357 = vsyncadd [#allocation9], 0
          %s358 = sshll.u32 %s3, 4
          %s359 = int_to_ptr.hbm [resolvable:$true] %s358
          %s360 = sshll.u32 [#allocation8], 4
          %s361 = int_to_ptr.vmem [resolvable:$true] %s360
          %366 = dma.hbm_to_vmem [thread:$0]  %s359, 512, %s361, [#allocation9], 128, 128, 8
        $region16: #{tpu_custom_call.1} parent=11 // pred_fallthru
          _
        // Predicated region
        $region17: #{tpu_custom_call.1} parent=11 // pred_check
          %p367 = pneg %p170
        $region18: #{tpu_custom_call.1} parent=11 // pred_check_branch
          %369 = sbr.rel (%p367) target = $region20
        $region19: #{tpu_custom_call.1} parent=11 // pred_region
          _
        $region20: #{tpu_custom_call.1} parent=11 // pred_fallthru
          _
        // Predicated region
        $region21: #{tpu_custom_call.1} parent=11 // pred_check
          %p370 = pneg %p191
        $region22: #{tpu_custom_call.1} parent=11 // pred_check_branch
          %372 = sbr.rel (%p370) target = $region24
        $region23: #{tpu_custom_call.1} parent=11 // pred_region
          %374 = vsyncadd [#allocation9], 0
          %s375 = sshll.u32 %s5, 4
          %s376 = int_to_ptr.hbm [resolvable:$true] %s375
          %s377 = sshll.u32 [#allocation10], 4
          %s378 = int_to_ptr.vmem [resolvable:$true] %s377
          %383 = dma.hbm_to_vmem [thread:$0]  %s376, 512, %s378, [#allocation9], 128, 128, 8
        $region24: #{tpu_custom_call.1} parent=11 // pred_fallthru
          _
        // Predicated region
        $region25: #{tpu_custom_call.1} parent=11 // pred_check
          %p384 = pneg %p212
        $region26: #{tpu_custom_call.1} parent=11 // pred_check_branch
          %386 = sbr.rel (%p384) target = $region28
        $region27: #{tpu_custom_call.1} parent=11 // pred_region
          _
        $region28: #{tpu_custom_call.1} parent=11 // pred_fallthru
          _
        // Predicated region
        $region29: #{tpu_custom_call.1} parent=11 // pred_check
          %p387 = pneg %p233
        $region30: #{tpu_custom_call.1} parent=11 // pred_check_branch
          %389 = sbr.rel (%p387) target = $region32
        $region31: #{tpu_custom_call.1} parent=11 // pred_region
          %391 = vsyncadd [#allocation12], 0
          %s392 = sshll.u32 %s7, 4
          %s393 = int_to_ptr.hbm [resolvable:$true] %s392
          %s394 = sshll.u32 [#allocation11], 4
          %s395 = int_to_ptr.vmem [resolvable:$true] %s394
          %400 = dma.hbm_to_vmem [thread:$0]  %s393, 512, %s395, [#allocation12], 128, 128, 8
        $region32: #{tpu_custom_call.1} parent=11 // pred_fallthru
          _
        // Predicated region
        $region33: #{tpu_custom_call.1} parent=11 // pred_check
          %p401 = pneg %p254
        $region34: #{tpu_custom_call.1} parent=11 // pred_check_branch
          %403 = sbr.rel (%p401) target = $region36
        $region35: #{tpu_custom_call.1} parent=11 // pred_region
          _
        $region36: #{tpu_custom_call.1} parent=11 // pred_fallthru
          _
      $region12: #{tpu_custom_call.1} parent=5 // pred_fallthru
        _
      %p404 = scmp.lt.s32.totalorder %s32, 2
      // Predicated region
      $region37: #{tpu_custom_call.1} parent=5 // pred_check
        %p405 = pneg %p404
      $region38: #{tpu_custom_call.1} parent=5 // pred_check_branch
        %407 = sbr.rel (%p405) target = $region40
      $region39: #{tpu_custom_call.1} parent=5 // pred_region
        // Predicated region
        $region41: #{tpu_custom_call.1} parent=39 // pred_check
          %p408 = pneg %p66
        $region42: #{tpu_custom_call.1} parent=39 // pred_check_branch
          %410 = sbr.rel (%p408) target = $region44
        $region43: #{tpu_custom_call.1} parent=39 // pred_region
          %s411 = sand.u32 %s56, 1
          %s412 = scalar_lea.sflag [#allocation3], %s411
          %s413 = sand.u32 %s56, 1
          %s414 = smul.addr %s413, 8
          %s415 = scalar_lea.vmem [#allocation2], %s414
          %417 = vsyncadd %s412, 0
          %s418 = sadd.s32 %s40, %s39
          %s419 = smul.addr %s418, 8
          %s420 = scalar_lea.hbm %s0, %s419
          %s422 = sshll.u32 %s420, 4
          %s423 = int_to_ptr.hbm [resolvable:$true] %s422
          %s424 = sshll.u32 %s415, 4
          %s425 = int_to_ptr.vmem [resolvable:$true] %s424
          %427 = dma.hbm_to_vmem [thread:$0]  %s423, 128, %s425, %s412
        $region44: #{tpu_custom_call.1} parent=39 // pred_fallthru
          _
        // Predicated region
        $region45: #{tpu_custom_call.1} parent=39 // pred_check
          %p428 = pneg %p94
        $region46: #{tpu_custom_call.1} parent=39 // pred_check_branch
          %430 = sbr.rel (%p428) target = $region48
        $region47: #{tpu_custom_call.1} parent=39 // pred_region
          %s431 = sand.u32 %s32, 1
          %s432 = scalar_lea.sflag [#allocation6], %s431
          %s433 = sand.u32 %s84, 1
          %s434 = smul.addr %s433, 8
          %s435 = scalar_lea.vmem [#allocation5], %s434
          %437 = vsyncadd %s432, 0
          %s438 = sadd.s32 %s40, %s39
          %s439 = smul.addr %s438, 8
          %s440 = scalar_lea.hbm %s1, %s439
          %s442 = sshll.u32 %s440, 4
          %s443 = int_to_ptr.hbm [resolvable:$true] %s442
          %s444 = sshll.u32 %s435, 4
          %s445 = int_to_ptr.vmem [resolvable:$true] %s444
          %447 = dma.hbm_to_vmem [thread:$0]  %s443, 128, %s445, %s432
        $region48: #{tpu_custom_call.1} parent=39 // pred_fallthru
          _
        // Predicated region
        $region49: #{tpu_custom_call.1} parent=39 // pred_check
          %p448 = pneg %p122
        $region50: #{tpu_custom_call.1} parent=39 // pred_check_branch
          %450 = sbr.rel (%p448) target = $region52
        $region51: #{tpu_custom_call.1} parent=39 // pred_region
          %s451 = sand.u32 %s32, 1
          %s452 = scalar_lea.sflag [#allocation6], %s451
          %s453 = sand.u32 %s112, 1
          %s454 = smul.addr %s453, 8
          %s455 = scalar_lea.vmem [#allocation7], %s454
          %457 = vsyncadd %s452, 0
          %s458 = sadd.s32 %s40, %s39
          %s459 = smul.addr %s458, 8
          %s460 = scalar_lea.hbm %s2, %s459
          %s462 = sshll.u32 %s460, 4
          %s463 = int_to_ptr.hbm [resolvable:$true] %s462
          %s464 = sshll.u32 %s455, 4
          %s465 = int_to_ptr.vmem [resolvable:$true] %s464
          %467 = dma.hbm_to_vmem [thread:$0]  %s463, 128, %s465, %s452
        $region52: #{tpu_custom_call.1} parent=39 // pred_fallthru
          _
      $region40: #{tpu_custom_call.1} parent=5 // pred_fallthru
        _
      %p468 = scmp.le.s32.totalorder 1, %s32
      %p469 = scmp.lt.s32.totalorder %s32, 3
      %p470 = pnand %p468, %p469
      %p471 = pneg %p470
      // Predicated region
      $region53: #{tpu_custom_call.1} parent=5 // pred_check
        _
      $region54: #{tpu_custom_call.1} parent=5 // pred_check_branch
        %473 = sbr.rel (%p470) target = $region56
      $region55: #{tpu_custom_call.1} parent=5 // pred_region
        %s474 = ssub.s32 %s32, 1
        %s475 = sand.u32 %s59, 1
        %s476 = scalar_lea.sflag [#allocation3], %s475
        %s477 = sand.u32 %s59, 1
        %s478 = smul.addr %s477, 8
        %s479 = scalar_lea.vmem [#allocation2], %s478
        // Predicated region
        $region57: #{tpu_custom_call.1} parent=55 // pred_check
          %p480 = pneg %p72
        $region58: #{tpu_custom_call.1} parent=55 // pred_check_branch
          %482 = sbr.rel (%p480) target = $region60
        $region59: #{tpu_custom_call.1} parent=55 // pred_region
          %484 = dma.done %s476, 128
        $region60: #{tpu_custom_call.1} parent=55 // pred_fallthru
          _
        %s485 = sand.u32 %s37, 1
        %s486 = scalar_lea.sflag [#allocation6], %s485
        %s487 = sand.u32 %s87, 1
        %s488 = smul.addr %s487, 8
        %s489 = scalar_lea.vmem [#allocation5], %s488
        // Predicated region
        $region61: #{tpu_custom_call.1} parent=55 // pred_check
          %p490 = pneg %p100
        $region62: #{tpu_custom_call.1} parent=55 // pred_check_branch
          %492 = sbr.rel (%p490) target = $region64
        $region63: #{tpu_custom_call.1} parent=55 // pred_region
          %494 = dma.done %s486, 128
        $region64: #{tpu_custom_call.1} parent=55 // pred_fallthru
          _
        %s495 = sand.u32 %s37, 1
        %s496 = scalar_lea.sflag [#allocation6], %s495
        %s497 = sand.u32 %s115, 1
        %s498 = smul.addr %s497, 8
        %s499 = scalar_lea.vmem [#allocation7], %s498
        // Predicated region
        $region65: #{tpu_custom_call.1} parent=55 // pred_check
          %p500 = pneg %p128
        $region66: #{tpu_custom_call.1} parent=55 // pred_check_branch
          %502 = sbr.rel (%p500) target = $region68
        $region67: #{tpu_custom_call.1} parent=55 // pred_region
          %504 = dma.done %s496, 128
        $region68: #{tpu_custom_call.1} parent=55 // pred_fallthru
          _
        // Predicated region
        $region69: #{tpu_custom_call.1} parent=55 // pred_check
          %p505 = pneg %p149
        $region70: #{tpu_custom_call.1} parent=55 // pred_check_branch
          %507 = sbr.rel (%p505) target = $region72
        $region71: #{tpu_custom_call.1} parent=55 // pred_region
          %509 = dma.done [#allocation9], 512
        $region72: #{tpu_custom_call.1} parent=55 // pred_fallthru
          _
        // Predicated region
        $region73: #{tpu_custom_call.1} parent=55 // pred_check
          %p510 = pneg %p191
        $region74: #{tpu_custom_call.1} parent=55 // pred_check_branch
          %512 = sbr.rel (%p510) target = $region76
        $region75: #{tpu_custom_call.1} parent=55 // pred_region
          %514 = dma.done [#allocation9], 512
        $region76: #{tpu_custom_call.1} parent=55 // pred_fallthru
          _
        // Predicated region
        $region77: #{tpu_custom_call.1} parent=55 // pred_check
          %p515 = pneg %p233
        $region78: #{tpu_custom_call.1} parent=55 // pred_check_branch
          %517 = sbr.rel (%p515) target = $region80
        $region79: #{tpu_custom_call.1} parent=55 // pred_region
          %519 = dma.done [#allocation12], 512
        $region80: #{tpu_custom_call.1} parent=55 // pred_fallthru
          _
        %s520 = sand.u32 %s59, 1
        %s521 = scalar_lea.sflag [#allocation3], %s520
        %s522 = sand.u32 %s59, 1
        %s523 = smul.addr %s522, 8
        %s524 = scalar_lea.vmem [#allocation2], %s523
        %p525 = pneg %p72
        %p526 = pneg %p69
        %s527 = sand.u32 %s37, 1
        %s528 = scalar_lea.sflag [#allocation6], %s527
        %s529 = sand.u32 %s87, 1
        %s530 = smul.addr %s529, 8
        %s531 = scalar_lea.vmem [#allocation5], %s530
        %p532 = pneg %p100
        %p533 = pneg %p97
        %s534 = sand.u32 %s37, 1
        %s535 = scalar_lea.sflag [#allocation6], %s534
        %s536 = sand.u32 %s115, 1
        %s537 = smul.addr %s536, 8
        %s538 = scalar_lea.vmem [#allocation7], %s537
        %p539 = pneg %p128
        %p540 = pneg %p125
        %p541 = pneg %p149
        %p542 = pneg %p146
        %p543 = pneg %p170
        %p544 = pneg %p167
        %p545 = pneg %p191
        %p546 = pneg %p188
        %p547 = pneg %p212
        %p548 = pneg %p209
        %p549 = pneg %p233
        %p550 = pneg %p230
        %p551 = pneg %p254
        %p552 = pneg %p251
        %p553 = pneg %p282
        %p554 = pneg %p279
        %s555 = sand.u32 %s269, 1
        %s556 = scalar_lea.sflag [#allocation4], %s555
        %s557 = sand.u32 %s269, 1
        %s558 = smul.addr %s557, 8
        %s559 = scalar_lea.vmem [#allocation13], %s558
        %p560 = pneg %p310
        %p561 = pneg %p307
        %s562 = sand.u32 %s37, 1
        %s563 = scalar_lea.sflag [#allocation15], %s562
        %s564 = sand.u32 %s297, 1
        %s565 = smul.addr %s564, 8
        %s566 = scalar_lea.vmem [#allocation14], %s565
        %p567 = pneg %p338
        %p568 = pneg %p335
        %s569 = sand.u32 %s37, 1
        %s570 = scalar_lea.sflag [#allocation15], %s569
        %s571 = sand.u32 %s325, 1
        %s572 = smul.addr %s571, 8
        %s573 = scalar_lea.vmem [#allocation16], %s572
        %v574 = vld [vmem:[%s479] sm:$0xff]
        %v575 = vld [vmem:[#allocation8] sm:$0xff]
        %v576 = vld [vmem:[#allocation8 + $0x8] sm:$0xff]
        %v577 = vld [vmem:[#allocation8 + $0x10] sm:$0xff]
        %v578 = vld [vmem:[#allocation8 + $0x18] sm:$0xff]
        %v579 = vld [vmem:[%s4] sm:$0x1]
        %v581 = vperm.slane %v579, 0
        %vm583 = vcmask 261120
        %v585 = vsel %vm583, %v574, 0
        %587 = vmatpush.msra.mxu0 0.0
        %588 = vmatpush.msra.mxu0 0.0
        %589 = vmatpush.msra.mxu0 0.0
        %590 = vmatpush.msra.mxu0 0.0
        %591 = vmatpush.msra.mxu0 0.0
        %592 = vmatpush.msra.mxu0 0.0
        %593 = vmatpush.msra.mxu0 0.0
        %594 = vmatpush.msra.mxu0 0.0
        %595 = vmatpush.msra.mxu0 0.0
        %596 = vmatpush.msra.mxu0 0.0
        %597 = vmatpush.msra.mxu0 0.0
        %598 = vmatpush.msra.mxu0 0.0
        %599 = vmatpush.msra.mxu0 %v578
        %600 = vmatpush.msra.mxu0 %v577
        %601 = vmatpush.msra.mxu0 %v576
        %602 = vmatpush.msra.mxu0 %v575
        %603 = vmatmul.f32.gmra.mxu0 %v585
        %v604 = vpop.f32.mrf.mxu0
        %v605 = vadd.f32 %v581, %v604
        %606 = vdwg.mxu0
        %v607 = vld [vmem:[%s489] sm:$0xff]
        %v608 = vld [vmem:[#allocation10] sm:$0xff]
        %v609 = vld [vmem:[#allocation10 + $0x8] sm:$0xff]
        %v610 = vld [vmem:[#allocation10 + $0x10] sm:$0xff]
        %v611 = vld [vmem:[#allocation10 + $0x18] sm:$0xff]
        %v612 = vld [vmem:[%s6] sm:$0x1]
        %v614 = vperm.slane %v612, 0
        %v617 = vsel %vm583, %v607, 0
        %619 = vmatpush.msra.mxu0 0.0
        %620 = vmatpush.msra.mxu0 0.0
        %621 = vmatpush.msra.mxu0 0.0
        %622 = vmatpush.msra.mxu0 0.0
        %623 = vmatpush.msra.mxu0 0.0
        %624 = vmatpush.msra.mxu0 0.0
        %625 = vmatpush.msra.mxu0 0.0
        %626 = vmatpush.msra.mxu0 0.0
        %627 = vmatpush.msra.mxu0 0.0
        %628 = vmatpush.msra.mxu0 0.0
        %629 = vmatpush.msra.mxu0 0.0
        %630 = vmatpush.msra.mxu0 0.0
        %631 = vmatpush.msra.mxu0 %v611
        %632 = vmatpush.msra.mxu0 %v610
        %633 = vmatpush.msra.mxu0 %v609
        %634 = vmatpush.msra.mxu0 %v608
        %635 = vmatmul.f32.gmra.mxu0 %v617
        %v636 = vpop.f32.mrf.mxu0
        %v637 = vadd.f32 %v614, %v636
        %638 = vdwg.mxu0
        %v639 = vld [vmem:[%s499] sm:$0xff]
        %v640 = vld [vmem:[#allocation11] sm:$0xff]
        %v641 = vld [vmem:[#allocation11 + $0x8] sm:$0xff]
        %v642 = vld [vmem:[#allocation11 + $0x10] sm:$0xff]
        %v643 = vld [vmem:[#allocation11 + $0x18] sm:$0xff]
        %v644 = vld [vmem:[%s8] sm:$0x1]
        %v646 = vperm.slane %v644, 0
        %v649 = vsel %vm583, %v639, 0
        %651 = vmatpush.msra.mxu0 0.0
        %652 = vmatpush.msra.mxu0 0.0
        %653 = vmatpush.msra.mxu0 0.0
        %654 = vmatpush.msra.mxu0 0.0
        %655 = vmatpush.msra.mxu0 0.0
        %656 = vmatpush.msra.mxu0 0.0
        %657 = vmatpush.msra.mxu0 0.0
        %658 = vmatpush.msra.mxu0 0.0
        %659 = vmatpush.msra.mxu0 0.0
        %660 = vmatpush.msra.mxu0 0.0
        %661 = vmatpush.msra.mxu0 0.0
        %662 = vmatpush.msra.mxu0 0.0
        %663 = vmatpush.msra.mxu0 %v643
        %664 = vmatpush.msra.mxu0 %v642
        %665 = vmatpush.msra.mxu0 %v641
        %666 = vmatpush.msra.mxu0 %v640
        %667 = vmatmul.f32.gmra.mxu0 %v649
        %v668 = vpop.f32.mrf.mxu0
        %v669 = vadd.f32 %v646, %v668
        %670 = vdwg.mxu0
        %v671 = vmul.f32 %v605, 0.35355338
        %672 = vst.msk [vmem:[%s559] sm:$0xff] %vm583, %v671
        %673 = vst.msk [vmem:[%s566] sm:$0xff] %vm583, %v637
        %674 = vst.msk [vmem:[%s573] sm:$0xff] %vm583, %v669
        %s675 = sand.u32 %s269, 1
        %s676 = scalar_lea.sflag [#allocation4], %s675
        %s677 = sand.u32 %s269, 1
        %s678 = smul.addr %s677, 8
        %s679 = scalar_lea.vmem [#allocation13], %s678
        %s680 = sand.u32 %s37, 1
        %s681 = scalar_lea.sflag [#allocation15], %s680
        %s682 = sand.u32 %s297, 1
        %s683 = smul.addr %s682, 8
        %s684 = scalar_lea.vmem [#allocation14], %s683
        %s685 = sand.u32 %s37, 1
        %s686 = scalar_lea.sflag [#allocation15], %s685
        %s687 = sand.u32 %s325, 1
        %s688 = smul.addr %s687, 8
        %s689 = scalar_lea.vmem [#allocation16], %s688
        // Predicated region
        $region81: #{tpu_custom_call.1} parent=55 // pred_check
          %p690 = pneg %p279
        $region82: #{tpu_custom_call.1} parent=55 // pred_check_branch
          %692 = sbr.rel (%p690) target = $region84
        $region83: #{tpu_custom_call.1} parent=55 // pred_region
          %694 = vsyncadd %s676, 0
          %s695 = sadd.s32 %s42, %s41
          %s696 = smul.addr %s695, 8
          %s697 = scalar_lea.hbm %s9, %s696
          %s699 = sshll.u32 %s679, 4
          %s700 = int_to_ptr.vmem [resolvable:$true] %s699
          %s701 = sshll.u32 %s697, 4
          %s702 = int_to_ptr.hbm [resolvable:$true] %s701
          %704 = dma.vmem_to_hbm [thread:$0]  %s700, 128, %s702, %s676
        $region84: #{tpu_custom_call.1} parent=55 // pred_fallthru
          _
        // Predicated region
        $region85: #{tpu_custom_call.1} parent=55 // pred_check
          %p705 = pneg %p307
        $region86: #{tpu_custom_call.1} parent=55 // pred_check_branch
          %707 = sbr.rel (%p705) target = $region88
        $region87: #{tpu_custom_call.1} parent=55 // pred_region
          %709 = vsyncadd %s681, 0
          %s710 = sadd.s32 %s42, %s41
          %s711 = smul.addr %s710, 8
          %s712 = scalar_lea.hbm %s10, %s711
          %s714 = sshll.u32 %s684, 4
          %s715 = int_to_ptr.vmem [resolvable:$true] %s714
          %s716 = sshll.u32 %s712, 4
          %s717 = int_to_ptr.hbm [resolvable:$true] %s716
          %719 = dma.vmem_to_hbm [thread:$0]  %s715, 128, %s717, %s681
        $region88: #{tpu_custom_call.1} parent=55 // pred_fallthru
          _
        // Predicated region
        $region89: #{tpu_custom_call.1} parent=55 // pred_check
          %p720 = pneg %p335
        $region90: #{tpu_custom_call.1} parent=55 // pred_check_branch
          %722 = sbr.rel (%p720) target = $region92
        $region91: #{tpu_custom_call.1} parent=55 // pred_region
          %724 = vsyncadd %s686, 0
          %s725 = sadd.s32 %s42, %s41
          %s726 = smul.addr %s725, 8
          %s727 = scalar_lea.hbm %s11, %s726
          %s729 = sshll.u32 %s689, 4
          %s730 = int_to_ptr.vmem [resolvable:$true] %s729
          %s731 = sshll.u32 %s727, 4
          %s732 = int_to_ptr.hbm [resolvable:$true] %s731
          %734 = dma.vmem_to_hbm [thread:$0]  %s730, 128, %s732, %s686
        $region92: #{tpu_custom_call.1} parent=55 // pred_fallthru
          _
      $region56: #{tpu_custom_call.1} parent=5 // pred_fallthru
        _
      %p735 = scmp.le.s32.totalorder 2, %s32
      // Predicated region
      $region93: #{tpu_custom_call.1} parent=5 // pred_check
        %p736 = pneg %p735
      $region94: #{tpu_custom_call.1} parent=5 // pred_check_branch
        %738 = sbr.rel (%p736) target = $region96
      $region95: #{tpu_custom_call.1} parent=5 // pred_region
        %s739 = ssub.s32 %s32, 2
        // Predicated region
        $region97: #{tpu_custom_call.1} parent=95 // pred_check
          %p740 = pneg %p285
        $region98: #{tpu_custom_call.1} parent=95 // pred_check_branch
          %742 = sbr.rel (%p740) target = $region100
        $region99: #{tpu_custom_call.1} parent=95 // pred_region
          %s743 = sand.u32 %s270, 1
          %s744 = scalar_lea.sflag [#allocation4], %s743
          %s745 = sand.u32 %s270, 1
          %s746 = smul.addr %s745, 8
          %s747 = scalar_lea.vmem [#allocation13], %s746
          %749 = dma.done %s744, 128
        $region100: #{tpu_custom_call.1} parent=95 // pred_fallthru
          _
        // Predicated region
        $region101: #{tpu_custom_call.1} parent=95 // pred_check
          %p750 = pneg %p313
        $region102: #{tpu_custom_call.1} parent=95 // pred_check_branch
          %752 = sbr.rel (%p750) target = $region104
        $region103: #{tpu_custom_call.1} parent=95 // pred_region
          %s753 = sand.u32 %s38, 1
          %s754 = scalar_lea.sflag [#allocation15], %s753
          %s755 = sand.u32 %s298, 1
          %s756 = smul.addr %s755, 8
          %s757 = scalar_lea.vmem [#allocation14], %s756
          %759 = dma.done %s754, 128
        $region104: #{tpu_custom_call.1} parent=95 // pred_fallthru
          _
        // Predicated region
        $region105: #{tpu_custom_call.1} parent=95 // pred_check
          %p760 = pneg %p341
        $region106: #{tpu_custom_call.1} parent=95 // pred_check_branch
          %762 = sbr.rel (%p760) target = $region108
        $region107: #{tpu_custom_call.1} parent=95 // pred_region
          %s763 = sand.u32 %s38, 1
          %s764 = scalar_lea.sflag [#allocation15], %s763
          %s765 = sand.u32 %s326, 1
          %s766 = smul.addr %s765, 8
          %s767 = scalar_lea.vmem [#allocation16], %s766
          %769 = dma.done %s764, 128
        $region108: #{tpu_custom_call.1} parent=95 // pred_fallthru
          _
      $region96: #{tpu_custom_call.1} parent=5 // pred_fallthru
        _
    $region6: #{tpu_custom_call.1} parent=1 // loop_footer
      %s36 = sadd.s32 1, %s32
    $region7: #{tpu_custom_call.1} parent=1 // loop_footer_branch
      %31 = sbr.rel target = $region3
    $region8: #{tpu_custom_call.1} parent=1 // loop_exit
      _
    %770 = vsyncpa [#allocation3], 1
    %s771 = scalar_lea.sflag [#allocation3], 1
    %772 = vsyncpa %s771, 1
    %773 = vsyncpa [#allocation6], 1
    %s774 = scalar_lea.sflag [#allocation6], 1
    %775 = vsyncpa %s774, 1
    %776 = vsyncpa [#allocation9], 1
    %777 = vsyncpa [#allocation12], 1
    %778 = vsyncpa [#allocation4], 1
    %s779 = scalar_lea.sflag [#allocation4], 1
    %780 = vsyncpa %s779, 1
    %781 = vsyncpa [#allocation15], 1
    %s782 = scalar_lea.sflag [#allocation15], 1
    %783 = vsyncpa %s782, 1

// kernel: tpu_custom_call.1
$region0: #{tpu_custom_call.1}
  #allocation0 [shape = 'u32[]', space=smem, size = 0x4, offset = 0x4, fixed_abs, tag = 'smem constant byte address 0x4 - core index']
  #allocation1 [shape = 'u32[72,128]{1,0:T(1,128)}', space=vmem, size = 0x9000, scoped, tag = 'internal scratch']
  %s0 = inlined_call_operand.hbm [shape: f32[2,8,32], index: 0, kind: input, shape index: {}]
  %s1 = inlined_call_operand.hbm [shape: f32[2,8,32], index: 1, kind: input, shape index: {}]
  %s2 = inlined_call_operand.hbm [shape: f32[2,8,32], index: 2, kind: input, shape index: {}]
  %s3 = inlined_call_operand.hbm [shape: f32[32,32], index: 3, kind: input, shape index: {}]
  %s4 = inlined_call_operand.vmem [shape: f32[1,32], index: 4, kind: input, shape index: {}]
  %s5 = inlined_call_operand.hbm [shape: f32[32,32], index: 5, kind: input, shape index: {}]
  %s6 = inlined_call_operand.vmem [shape: f32[1,32], index: 6, kind: input, shape index: {}]
  %s7 = inlined_call_operand.hbm [shape: f32[32,32], index: 7, kind: input, shape index: {}]
  %s8 = inlined_call_operand.vmem [shape: f32[1,32], index: 8, kind: input, shape index: {}]
  %s9 = inlined_call_operand.hbm [shape: f32[2,8,32], index: 9, kind: output, shape index: {0}]
  %s10 = inlined_call_operand.hbm [shape: f32[2,8,32], index: 10, kind: output, shape index: {1}]
  %s11 = inlined_call_operand.hbm [shape: f32[2,8,32], index: 11, kind: output, shape index: {2}]
  %12 = xla_tuple %s9, %s10, %s11
  %s13 = sld [smem:[#allocation0]]
  $region109: #{tpu_custom_call.1} parent=0
    _
  %s15 = ssub.s32 1, %s13
  %s16 = scalar_select 0, %s15, %s13
  $region1: #{tpu_custom_call.1} parent=0
    #allocation2 [shape = 'u8[8192]{0}', space=vmem, size = 0x2000, scoped, tag = 'input window, operand 0']
    #allocation3 [shape = 's32[2]{0}', space=sflag, size = 0x8, scoped, tag = 'scoped memory for tpu_custom_call.1']
    #allocation4 [shape = 's32[2]{0}', space=sflag, size = 0x8, scoped, tag = 'scoped memory for tpu_custom_call.1']
    #allocation5 [shape = 'u8[8192]{0}', space=vmem, size = 0x2000, scoped, tag = 'input window, operand 1']
    #allocation6 [shape = 's32[2]{0}', space=sflag, size = 0x8, scoped, tag = 'scoped memory for tpu_custom_call.1']
    #allocation7 [shape = 'u8[8192]{0}', space=vmem, size = 0x2000, scoped, tag = 'input window, operand 2']
    #allocation8 [shape = 'u8[16384]{0}', space=vmem, size = 0x4000, scoped, tag = 'input window, operand 3, single buffered']
    #allocation9 [shape = 's32[1]{0}', space=sflag, size = 0x4, scoped, tag = 'scoped memory for tpu_custom_call.1']
    #allocation10 [shape = 'u8[16384]{0}', space=vmem, size = 0x4000, scoped, tag = 'input window, operand 5, single buffered']
    #allocation11 [shape = 'u8[16384]{0}', space=vmem, size = 0x4000, scoped, tag = 'input window, operand 7, single buffered']
    #allocation12 [shape = 's32[1]{0}', space=sflag, size = 0x4, scoped, tag = 'scoped memory for tpu_custom_call.1']
    #allocation13 [shape = 'u8[8192]{0}', space=vmem, size = 0x2000, scoped, tag = 'output window, operand 0']
    #allocation14 [shape = 'u8[8192]{0}', space=vmem, size = 0x2000, scoped, tag = 'output window, operand 1']
    #allocation15 [shape = 's32[2]{0}', space=sflag, size = 0x8, scoped, tag = 'scoped memory for tpu_custom_call.1']
    #allocation16 [shape = 'u8[8192]{0}', space=vmem, size = 0x2000, scoped, tag = 'output window, operand 2']
    %17 = vsyncpa [#allocation3], 0
    %s18 = scalar_lea.sflag [#allocation3], 1
    %19 = vsyncpa %s18, 0
    %20 = vsyncpa [#allocation6], 0
    %s21 = scalar_lea.sflag [#allocation6], 1
    %22 = vsyncpa %s21, 0
    %23 = vsyncpa [#allocation9], 0
    %24 = vsyncpa [#allocation12], 0
    %25 = vsyncpa [#allocation4], 0
    %s26 = scalar_lea.sflag [#allocation4], 1
    %27 = vsyncpa %s26, 0
    %28 = vsyncpa [#allocation15], 0
    %s29 = scalar_lea.sflag [#allocation15], 1
    %30 = vsyncpa %s29, 0
    loop: start=0, step=1, limit=4
    $region2: #{tpu_custom_call.1} parent=1 // loop_pre_header
      _
    $region3: #{tpu_custom_call.1} parent=1 // loop_header
      %s32 = sphi 0, %s36
      %p33 = scmp.ge.s32.totalorder %s32, 4
      %s39 = sphi 0, %s51
      %s40 = sphi 0, %s47
      %s41 = sphi 0, %s39
      %s42 = sphi 0, %s40
      %s43 = sphi 0, %s41
      %s44 = sphi 0, %s42
      %s56 = sphi 0, %s58
      %s59 = sphi 0, %s56
      %s60 = sphi 0, %s59
      %s76 = sphi 0, %s60
      %s84 = sphi 0, %s86
      %s87 = sphi 0, %s84
      %s88 = sphi 0, %s87
      %s104 = sphi 0, %s88
      %s112 = sphi 0, %s114
      %s115 = sphi 0, %s112
      %s116 = sphi 0, %s115
      %s132 = sphi 0, %s116
      %s136 = sphi 0, %s136
      %s138 = sphi 0, %s136
      %s139 = sphi 0, %s138
      %s153 = sphi 0, %s139
      %s157 = sphi 0, %s157
      %s159 = sphi 0, %s157
      %s160 = sphi 0, %s159
      %s174 = sphi 0, %s160
      %s178 = sphi 0, %s178
      %s180 = sphi 0, %s178
      %s181 = sphi 0, %s180
      %s195 = sphi 0, %s181
      %s199 = sphi 0, %s199
      %s201 = sphi 0, %s199
      %s202 = sphi 0, %s201
      %s216 = sphi 0, %s202
      %s220 = sphi 0, %s220
      %s222 = sphi 0, %s220
      %s223 = sphi 0, %s222
      %s237 = sphi 0, %s223
      %s241 = sphi 0, %s241
      %s243 = sphi 0, %s241
      %s244 = sphi 0, %s243
      %s258 = sphi 0, %s244
      %s266 = sphi 0, %s268
      %s269 = sphi 0, %s266
      %s270 = sphi 0, %s269
      %s286 = sphi 0, %s270
      %s294 = sphi 0, %s296
      %s297 = sphi 0, %s294
      %s298 = sphi 0, %s297
      %s314 = sphi 0, %s298
      %s322 = sphi 0, %s324
      %s325 = sphi 0, %s322
      %s326 = sphi 0, %s325
      %s342 = sphi 0, %s326
    $region4: #{tpu_custom_call.1} parent=1 // loop_header_branch
      %35 = sbr.rel (%p33) target = $region8
    $region5: #{tpu_custom_call.1} parent=1 // loop_body
      %s37 = ssub.s32 %s32, 1
      %s38 = ssub.s32 %s32, 2
      %s45 = sadd.s32 1, %s40
      %p46 = scmp.ge.s32.totalorder %s45, 1
      %s47 = scalar_select %p46, 0, %s45
      %s48 = sadd.s32 1, %s39
      %s49 = scalar_select %p46, %s48, %s39
      %p50 = scmp.ge.s32.totalorder %s49, 2
      %s51 = scalar_select %p50, 0, %s49
      %s52 = ssub.s32 %s39, %s51
      %s53 = ssub.s32 %s40, %s47
      %s54 = sor.u32 %s52, %s53
      %p55 = scmp.eq.s32.totalorder %s54, 0
      %s57 = sadd.s32 %s56, 1
      %s58 = scalar_select %p55, %s56, %s57
      %p61 = pneg %p55
      %p62 = scmp.eq.s32.totalorder %s32, 1
      %p63 = por %p61, %p62
      %p64 = scmp.ne.s32.totalorder %s56, %s59
      %p65 = scmp.eq.s32.totalorder %s32, 0
      %p66 = por %p64, %p65
      %p67 = scmp.ne.s32.totalorder %s56, %s59
      %p68 = scmp.eq.s32.totalorder %s37, 1
      %p69 = por %p67, %p68
      %p70 = scmp.ne.s32.totalorder %s59, %s60
      %p71 = scmp.eq.s32.totalorder %s37, 0
      %p72 = por %p70, %p71
      %p73 = scmp.ne.s32.totalorder %s59, %s60
      %p74 = scmp.eq.s32.totalorder %s38, 1
      %p75 = por %p73, %p74
      %p77 = scmp.ne.s32.totalorder %s60, %s76
      %p78 = scmp.eq.s32.totalorder %s38, 0
      %p79 = por %p77, %p78
      %s80 = ssub.s32 %s39, %s51
      %s81 = ssub.s32 %s40, %s47
      %s82 = sor.u32 %s80, %s81
      %p83 = scmp.eq.s32.totalorder %s82, 0
      %s85 = sadd.s32 %s84, 1
      %s86 = scalar_select %p83, %s84, %s85
      %p89 = pneg %p83
      %p90 = scmp.eq.s32.totalorder %s32, 1
      %p91 = por %p89, %p90
      %p92 = scmp.ne.s32.totalorder %s84, %s87
      %p93 = scmp.eq.s32.totalorder %s32, 0
      %p94 = por %p92, %p93
      %p95 = scmp.ne.s32.totalorder %s84, %s87
      %p96 = scmp.eq.s32.totalorder %s37, 1
      %p97 = por %p95, %p96
      %p98 = scmp.ne.s32.totalorder %s87, %s88
      %p99 = scmp.eq.s32.totalorder %s37, 0
      %p100 = por %p98, %p99
      %p101 = scmp.ne.s32.totalorder %s87, %s88
      %p102 = scmp.eq.s32.totalorder %s38, 1
      %p103 = por %p101, %p102
      %p105 = scmp.ne.s32.totalorder %s88, %s104
      %p106 = scmp.eq.s32.totalorder %s38, 0
      %p107 = por %p105, %p106
      %s108 = ssub.s32 %s39, %s51
      %s109 = ssub.s32 %s40, %s47
      %s110 = sor.u32 %s108, %s109
      %p111 = scmp.eq.s32.totalorder %s110, 0
      %s113 = sadd.s32 %s112, 1
      %s114 = scalar_select %p111, %s112, %s113
      %p117 = pneg %p111
      %p118 = scmp.eq.s32.totalorder %s32, 1
      %p119 = por %p117, %p118
      %p120 = scmp.ne.s32.totalorder %s112, %s115
      %p121 = scmp.eq.s32.totalorder %s32, 0
      %p122 = por %p120, %p121
      %p123 = scmp.ne.s32.totalorder %s112, %s115
      %p124 = scmp.eq.s32.totalorder %s37, 1
      %p125 = por %p123, %p124
      %p126 = scmp.ne.s32.totalorder %s115, %s116
      %p127 = scmp.eq.s32.totalorder %s37, 0
      %p128 = por %p126, %p127
      %p129 = scmp.ne.s32.totalorder %s115, %s116
      %p130 = scmp.eq.s32.totalorder %s38, 1
      %p131 = por %p129, %p130
      %p133 = scmp.ne.s32.totalorder %s116, %s132
      %p134 = scmp.eq.s32.totalorder %s38, 0
      %p135 = por %p133, %p134
      %s137 = sadd.s32 %s136, 1
      %p140 = scmp.eq.s32.totalorder %s32, 1
      %p141 = scmp.ne.s32.totalorder %s136, %s138
      %p142 = scmp.eq.s32.totalorder %s32, 0
      %p143 = por %p141, %p142
      %p144 = scmp.ne.s32.totalorder %s136, %s138
      %p145 = scmp.eq.s32.totalorder %s37, 1
      %p146 = por %p144, %p145
      %p147 = scmp.ne.s32.totalorder %s138, %s139
      %p148 = scmp.eq.s32.totalorder %s37, 0
      %p149 = por %p147, %p148
      %p150 = scmp.ne.s32.totalorder %s138, %s139
      %p151 = scmp.eq.s32.totalorder %s38, 1
      %p152 = por %p150, %p151
      %p154 = scmp.ne.s32.totalorder %s139, %s153
      %p155 = scmp.eq.s32.totalorder %s38, 0
      %p156 = por %p154, %p155
      %s158 = sadd.s32 %s157, 1
      %p161 = scmp.eq.s32.totalorder %s32, 1
      %p162 = scmp.ne.s32.totalorder %s157, %s159
      %p163 = scmp.eq.s32.totalorder %s32, 0
      %p164 = por %p162, %p163
      %p165 = scmp.ne.s32.totalorder %s157, %s159
      %p166 = scmp.eq.s32.totalorder %s37, 1
      %p167 = por %p165, %p166
      %p168 = scmp.ne.s32.totalorder %s159, %s160
      %p169 = scmp.eq.s32.totalorder %s37, 0
      %p170 = por %p168, %p169
      %p171 = scmp.ne.s32.totalorder %s159, %s160
      %p172 = scmp.eq.s32.totalorder %s38, 1
      %p173 = por %p171, %p172
      %p175 = scmp.ne.s32.totalorder %s160, %s174
      %p176 = scmp.eq.s32.totalorder %s38, 0
      %p177 = por %p175, %p176
      %s179 = sadd.s32 %s178, 1
      %p182 = scmp.eq.s32.totalorder %s32, 1
      %p183 = scmp.ne.s32.totalorder %s178, %s180
      %p184 = scmp.eq.s32.totalorder %s32, 0
      %p185 = por %p183, %p184
      %p186 = scmp.ne.s32.totalorder %s178, %s180
      %p187 = scmp.eq.s32.totalorder %s37, 1
      %p188 = por %p186, %p187
      %p189 = scmp.ne.s32.totalorder %s180, %s181
      %p190 = scmp.eq.s32.totalorder %s37, 0
      %p191 = por %p189, %p190
      %p192 = scmp.ne.s32.totalorder %s180, %s181
      %p193 = scmp.eq.s32.totalorder %s38, 1
      %p194 = por %p192, %p193
      %p196 = scmp.ne.s32.totalorder %s181, %s195
      %p197 = scmp.eq.s32.totalorder %s38, 0
      %p198 = por %p196, %p197
      %s200 = sadd.s32 %s199, 1
      %p203 = scmp.eq.s32.totalorder %s32, 1
      %p204 = scmp.ne.s32.totalorder %s199, %s201
      %p205 = scmp.eq.s32.totalorder %s32, 0
      %p206 = por %p204, %p205
      %p207 = scmp.ne.s32.totalorder %s199, %s201
      %p208 = scmp.eq.s32.totalorder %s37, 1
      %p209 = por %p207, %p208
      %p210 = scmp.ne.s32.totalorder %s201, %s202
      %p211 = scmp.eq.s32.totalorder %s37, 0
      %p212 = por %p210, %p211
      %p213 = scmp.ne.s32.totalorder %s201, %s202
      %p214 = scmp.eq.s32.totalorder %s38, 1
      %p215 = por %p213, %p214
      %p217 = scmp.ne.s32.totalorder %s202, %s216
      %p218 = scmp.eq.s32.totalorder %s38, 0
      %p219 = por %p217, %p218
      %s221 = sadd.s32 %s220, 1
      %p224 = scmp.eq.s32.totalorder %s32, 1
      %p225 = scmp.ne.s32.totalorder %s220, %s222
      %p226 = scmp.eq.s32.totalorder %s32, 0
      %p227 = por %p225, %p226
      %p228 = scmp.ne.s32.totalorder %s220, %s222
      %p229 = scmp.eq.s32.totalorder %s37, 1
      %p230 = por %p228, %p229
      %p231 = scmp.ne.s32.totalorder %s222, %s223
      %p232 = scmp.eq.s32.totalorder %s37, 0
      %p233 = por %p231, %p232
      %p234 = scmp.ne.s32.totalorder %s222, %s223
      %p235 = scmp.eq.s32.totalorder %s38, 1
      %p236 = por %p234, %p235
      %p238 = scmp.ne.s32.totalorder %s223, %s237
      %p239 = scmp.eq.s32.totalorder %s38, 0
      %p240 = por %p238, %p239
      %s242 = sadd.s32 %s241, 1
      %p245 = scmp.eq.s32.totalorder %s32, 1
      %p246 = scmp.ne.s32.totalorder %s241, %s243
      %p247 = scmp.eq.s32.totalorder %s32, 0
      %p248 = por %p246, %p247
      %p249 = scmp.ne.s32.totalorder %s241, %s243
      %p250 = scmp.eq.s32.totalorder %s37, 1
      %p251 = por %p249, %p250
      %p252 = scmp.ne.s32.totalorder %s243, %s244
      %p253 = scmp.eq.s32.totalorder %s37, 0
      %p254 = por %p252, %p253
      %p255 = scmp.ne.s32.totalorder %s243, %s244
      %p256 = scmp.eq.s32.totalorder %s38, 1
      %p257 = por %p255, %p256
      %p259 = scmp.ne.s32.totalorder %s244, %s258
      %p260 = scmp.eq.s32.totalorder %s38, 0
      %p261 = por %p259, %p260
      %s262 = ssub.s32 %s39, %s51
      %s263 = ssub.s32 %s40, %s47
      %s264 = sor.u32 %s262, %s263
      %p265 = scmp.eq.s32.totalorder %s264, 0
      %s267 = sadd.s32 %s266, 1
      %s268 = scalar_select %p265, %s266, %s267
      %p271 = pneg %p265
      %p272 = scmp.eq.s32.totalorder %s32, 1
      %p273 = por %p271, %p272
      %p274 = scmp.ne.s32.totalorder %s266, %s269
      %p275 = scmp.eq.s32.totalorder %s32, 0
      %p276 = por %p274, %p275
      %p277 = scmp.ne.s32.totalorder %s266, %s269
      %p278 = scmp.eq.s32.totalorder %s37, 1
      %p279 = por %p277, %p278
      %p280 = scmp.ne.s32.totalorder %s269, %s270
      %p281 = scmp.eq.s32.totalorder %s37, 0
      %p282 = por %p280, %p281
      %p283 = scmp.ne.s32.totalorder %s269, %s270
      %p284 = scmp.eq.s32.totalorder %s38, 1
      %p285 = por %p283, %p284
      %p287 = scmp.ne.s32.totalorder %s270, %s286
      %p288 = scmp.eq.s32.totalorder %s38, 0
      %p289 = por %p287, %p288
      %s290 = ssub.s32 %s39, %s51
      %s291 = ssub.s32 %s40, %s47
      %s292 = sor.u32 %s290, %s291
      %p293 = scmp.eq.s32.totalorder %s292, 0
      %s295 = sadd.s32 %s294, 1
      %s296 = scalar_select %p293, %s294, %s295
      %p299 = pneg %p293
      %p300 = scmp.eq.s32.totalorder %s32, 1
      %p301 = por %p299, %p300
      %p302 = scmp.ne.s32.totalorder %s294, %s297
      %p303 = scmp.eq.s32.totalorder %s32, 0
      %p304 = por %p302, %p303
      %p305 = scmp.ne.s32.totalorder %s294, %s297
      %p306 = scmp.eq.s32.totalorder %s37, 1
      %p307 = por %p305, %p306
      %p308 = scmp.ne.s32.totalorder %s297, %s298
      %p309 = scmp.eq.s32.totalorder %s37, 0
      %p310 = por %p308, %p309
      %p311 = scmp.ne.s32.totalorder %s297, %s298
      %p312 = scmp.eq.s32.totalorder %s38, 1
      %p313 = por %p311, %p312
      %p315 = scmp.ne.s32.totalorder %s298, %s314
      %p316 = scmp.eq.s32.totalorder %s38, 0
      %p317 = por %p315, %p316
      %s318 = ssub.s32 %s39, %s51
      %s319 = ssub.s32 %s40, %s47
      %s320 = sor.u32 %s318, %s319
      %p321 = scmp.eq.s32.totalorder %s320, 0
      %s323 = sadd.s32 %s322, 1
      %s324 = scalar_select %p321, %s322, %s323
      %p327 = pneg %p321
      %p328 = scmp.eq.s32.totalorder %s32, 1
      %p329 = por %p327, %p328
      %p330 = scmp.ne.s32.totalorder %s322, %s325
      %p331 = scmp.eq.s32.totalorder %s32, 0
      %p332 = por %p330, %p331
      %p333 = scmp.ne.s32.totalorder %s322, %s325
      %p334 = scmp.eq.s32.totalorder %s37, 1
      %p335 = por %p333, %p334
      %p336 = scmp.ne.s32.totalorder %s325, %s326
      %p337 = scmp.eq.s32.totalorder %s37, 0
      %p338 = por %p336, %p337
      %p339 = scmp.ne.s32.totalorder %s325, %s326
      %p340 = scmp.eq.s32.totalorder %s38, 1
      %p341 = por %p339, %p340
      %p343 = scmp.ne.s32.totalorder %s326, %s342
      %p344 = scmp.eq.s32.totalorder %s38, 0
      %p345 = por %p343, %p344
      %p346 = scmp.le.s32.totalorder 1, %s32
      %p347 = scmp.lt.s32.totalorder %s32, 3
      %p348 = pnand %p346, %p347
      %p349 = pneg %p348
      // Predicated region
      $region9: #{tpu_custom_call.1} parent=5 // pred_check
        _
      $region10: #{tpu_custom_call.1} parent=5 // pred_check_branch
        %351 = sbr.rel (%p348) target = $region12
      $region11: #{tpu_custom_call.1} parent=5 // pred_region
        %s352 = ssub.s32 %s32, 1
        // Predicated region
        $region13: #{tpu_custom_call.1} parent=11 // pred_check
          %p353 = pneg %p149
        $region14: #{tpu_custom_call.1} parent=11 // pred_check_branch
          %355 = sbr.rel (%p353) target = $region16
        $region15: #{tpu_custom_call.1} parent=11 // pred_region
          %357 = vsyncadd [#allocation9], 0
          %s358 = sshll.u32 %s3, 4
          %s359 = int_to_ptr.hbm [resolvable:$true] %s358
          %s360 = sshll.u32 [#allocation8], 4
          %s361 = int_to_ptr.vmem [resolvable:$true] %s360
          %366 = dma.hbm_to_vmem [thread:$0]  %s359, 512, %s361, [#allocation9], 128, 128, 8
        $region16: #{tpu_custom_call.1} parent=11 // pred_fallthru
          _
        // Predicated region
        $region17: #{tpu_custom_call.1} parent=11 // pred_check
          %p367 = pneg %p170
        $region18: #{tpu_custom_call.1} parent=11 // pred_check_branch
          %369 = sbr.rel (%p367) target = $region20
        $region19: #{tpu_custom_call.1} parent=11 // pred_region
          _
        $region20: #{tpu_custom_call.1} parent=11 // pred_fallthru
          _
        // Predicated region
        $region21: #{tpu_custom_call.1} parent=11 // pred_check
          %p370 = pneg %p191
        $region22: #{tpu_custom_call.1} parent=11 // pred_check_branch
          %372 = sbr.rel (%p370) target = $region24
        $region23: #{tpu_custom_call.1} parent=11 // pred_region
          %374 = vsyncadd [#allocation9], 0
          %s375 = sshll.u32 %s5, 4
          %s376 = int_to_ptr.hbm [resolvable:$true] %s375
          %s377 = sshll.u32 [#allocation10], 4
          %s378 = int_to_ptr.vmem [resolvable:$true] %s377
          %383 = dma.hbm_to_vmem [thread:$0]  %s376, 512, %s378, [#allocation9], 128, 128, 8
        $region24: #{tpu_custom_call.1} parent=11 // pred_fallthru
          _
        // Predicated region
        $region25: #{tpu_custom_call.1} parent=11 // pred_check
          %p384 = pneg %p212
        $region26: #{tpu_custom_call.1} parent=11 // pred_check_branch
          %386 = sbr.rel (%p384) target = $region28
        $region27: #{tpu_custom_call.1} parent=11 // pred_region
          _
        $region28: #{tpu_custom_call.1} parent=11 // pred_fallthru
          _
        // Predicated region
        $region29: #{tpu_custom_call.1} parent=11 // pred_check
          %p387 = pneg %p233
        $region30: #{tpu_custom_call.1} parent=11 // pred_check_branch
          %389 = sbr.rel (%p387) target = $region32
        $region31: #{tpu_custom_call.1} parent=11 // pred_region
          %391 = vsyncadd [#allocation12], 0
          %s392 = sshll.u32 %s7, 4
          %s393 = int_to_ptr.hbm [resolvable:$true] %s392
          %s394 = sshll.u32 [#allocation11], 4
          %s395 = int_to_ptr.vmem [resolvable:$true] %s394
          %400 = dma.hbm_to_vmem [thread:$0]  %s393, 512, %s395, [#allocation12], 128, 128, 8
        $region32: #{tpu_custom_call.1} parent=11 // pred_fallthru
          _
        // Predicated region
        $region33: #{tpu_custom_call.1} parent=11 // pred_check
          %p401 = pneg %p254
        $region34: #{tpu_custom_call.1} parent=11 // pred_check_branch
          %403 = sbr.rel (%p401) target = $region36
        $region35: #{tpu_custom_call.1} parent=11 // pred_region
          _
        $region36: #{tpu_custom_call.1} parent=11 // pred_fallthru
          _
      $region12: #{tpu_custom_call.1} parent=5 // pred_fallthru
        _
      %p404 = scmp.lt.s32.totalorder %s32, 2
      // Predicated region
      $region37: #{tpu_custom_call.1} parent=5 // pred_check
        %p405 = pneg %p404
      $region38: #{tpu_custom_call.1} parent=5 // pred_check_branch
        %407 = sbr.rel (%p405) target = $region40
      $region39: #{tpu_custom_call.1} parent=5 // pred_region
        // Predicated region
        $region41: #{tpu_custom_call.1} parent=39 // pred_check
          %p408 = pneg %p66
        $region42: #{tpu_custom_call.1} parent=39 // pred_check_branch
          %410 = sbr.rel (%p408) target = $region44
        $region43: #{tpu_custom_call.1} parent=39 // pred_region
          %s411 = sand.u32 %s56, 1
          %s412 = scalar_lea.sflag [#allocation3], %s411
          %s413 = sand.u32 %s56, 1
          %s414 = smul.addr %s413, 8
          %s415 = scalar_lea.vmem [#allocation2], %s414
          %417 = vsyncadd %s412, 0
          %s418 = sadd.s32 %s40, %s39
          %s419 = smul.addr %s418, 8
          %s420 = scalar_lea.hbm %s0, %s419
          %s422 = sshll.u32 %s420, 4
          %s423 = int_to_ptr.hbm [resolvable:$true] %s422
          %s424 = sshll.u32 %s415, 4
          %s425 = int_to_ptr.vmem [resolvable:$true] %s424
          %427 = dma.hbm_to_vmem [thread:$0]  %s423, 128, %s425, %s412
        $region44: #{tpu_custom_call.1} parent=39 // pred_fallthru
          _
        // Predicated region
        $region45: #{tpu_custom_call.1} parent=39 // pred_check
          %p428 = pneg %p94
        $region46: #{tpu_custom_call.1} parent=39 // pred_check_branch
          %430 = sbr.rel (%p428) target = $region48
        $region47: #{tpu_custom_call.1} parent=39 // pred_region
          %s431 = sand.u32 %s32, 1
          %s432 = scalar_lea.sflag [#allocation6], %s431
          %s433 = sand.u32 %s84, 1
          %s434 = smul.addr %s433, 8
          %s435 = scalar_lea.vmem [#allocation5], %s434
          %437 = vsyncadd %s432, 0
          %s438 = sadd.s32 %s40, %s39
          %s439 = smul.addr %s438, 8
          %s440 = scalar_lea.hbm %s1, %s439
          %s442 = sshll.u32 %s440, 4
          %s443 = int_to_ptr.hbm [resolvable:$true] %s442
          %s444 = sshll.u32 %s435, 4
          %s445 = int_to_ptr.vmem [resolvable:$true] %s444
          %447 = dma.hbm_to_vmem [thread:$0]  %s443, 128, %s445, %s432
        $region48: #{tpu_custom_call.1} parent=39 // pred_fallthru
          _
        // Predicated region
        $region49: #{tpu_custom_call.1} parent=39 // pred_check
          %p448 = pneg %p122
        $region50: #{tpu_custom_call.1} parent=39 // pred_check_branch
          %450 = sbr.rel (%p448) target = $region52
        $region51: #{tpu_custom_call.1} parent=39 // pred_region
          %s451 = sand.u32 %s32, 1
          %s452 = scalar_lea.sflag [#allocation6], %s451
          %s453 = sand.u32 %s112, 1
          %s454 = smul.addr %s453, 8
          %s455 = scalar_lea.vmem [#allocation7], %s454
          %457 = vsyncadd %s452, 0
          %s458 = sadd.s32 %s40, %s39
          %s459 = smul.addr %s458, 8
          %s460 = scalar_lea.hbm %s2, %s459
          %s462 = sshll.u32 %s460, 4
          %s463 = int_to_ptr.hbm [resolvable:$true] %s462
          %s464 = sshll.u32 %s455, 4
          %s465 = int_to_ptr.vmem [resolvable:$true] %s464
          %467 = dma.hbm_to_vmem [thread:$0]  %s463, 128, %s465, %s452
        $region52: #{tpu_custom_call.1} parent=39 // pred_fallthru
          _
      $region40: #{tpu_custom_call.1} parent=5 // pred_fallthru
        _
      %p468 = scmp.le.s32.totalorder 1, %s32
      %p469 = scmp.lt.s32.totalorder %s32, 3
      %p470 = pnand %p468, %p469
      %p471 = pneg %p470
      // Predicated region
      $region53: #{tpu_custom_call.1} parent=5 // pred_check
        _
      $region54: #{tpu_custom_call.1} parent=5 // pred_check_branch
        %473 = sbr.rel (%p470) target = $region56
      $region55: #{tpu_custom_call.1} parent=5 // pred_region
        %s474 = ssub.s32 %s32, 1
        %s475 = sand.u32 %s59, 1
        %s476 = scalar_lea.sflag [#allocation3], %s475
        %s477 = sand.u32 %s59, 1
        %s478 = smul.addr %s477, 8
        %s479 = scalar_lea.vmem [#allocation2], %s478
        // Predicated region
        $region57: #{tpu_custom_call.1} parent=55 // pred_check
          %p480 = pneg %p72
        $region58: #{tpu_custom_call.1} parent=55 // pred_check_branch
          %482 = sbr.rel (%p480) target = $region60
        $region59: #{tpu_custom_call.1} parent=55 // pred_region
          %484 = dma.done %s476, 128
        $region60: #{tpu_custom_call.1} parent=55 // pred_fallthru
          _
        %s485 = sand.u32 %s37, 1
        %s486 = scalar_lea.sflag [#allocation6], %s485
        %s487 = sand.u32 %s87, 1
        %s488 = smul.addr %s487, 8
        %s489 = scalar_lea.vmem [#allocation5], %s488
        // Predicated region
        $region61: #{tpu_custom_call.1} parent=55 // pred_check
          %p490 = pneg %p100
        $region62: #{tpu_custom_call.1} parent=55 // pred_check_branch
          %492 = sbr.rel (%p490) target = $region64
        $region63: #{tpu_custom_call.1} parent=55 // pred_region
          %494 = dma.done %s486, 128
        $region64: #{tpu_custom_call.1} parent=55 // pred_fallthru
          _
        %s495 = sand.u32 %s37, 1
        %s496 = scalar_lea.sflag [#allocation6], %s495
        %s497 = sand.u32 %s115, 1
        %s498 = smul.addr %s497, 8
        %s499 = scalar_lea.vmem [#allocation7], %s498
        // Predicated region
        $region65: #{tpu_custom_call.1} parent=55 // pred_check
          %p500 = pneg %p128
        $region66: #{tpu_custom_call.1} parent=55 // pred_check_branch
          %502 = sbr.rel (%p500) target = $region68
        $region67: #{tpu_custom_call.1} parent=55 // pred_region
          %504 = dma.done %s496, 128
        $region68: #{tpu_custom_call.1} parent=55 // pred_fallthru
          _
        // Predicated region
        $region69: #{tpu_custom_call.1} parent=55 // pred_check
          %p505 = pneg %p149
        $region70: #{tpu_custom_call.1} parent=55 // pred_check_branch
          %507 = sbr.rel (%p505) target = $region72
        $region71: #{tpu_custom_call.1} parent=55 // pred_region
          %509 = dma.done [#allocation9], 512
        $region72: #{tpu_custom_call.1} parent=55 // pred_fallthru
          _
        // Predicated region
        $region73: #{tpu_custom_call.1} parent=55 // pred_check
          %p510 = pneg %p191
        $region74: #{tpu_custom_call.1} parent=55 // pred_check_branch
          %512 = sbr.rel (%p510) target = $region76
        $region75: #{tpu_custom_call.1} parent=55 // pred_region
          %514 = dma.done [#allocation9], 512
        $region76: #{tpu_custom_call.1} parent=55 // pred_fallthru
          _
        // Predicated region
        $region77: #{tpu_custom_call.1} parent=55 // pred_check
          %p515 = pneg %p233
        $region78: #{tpu_custom_call.1} parent=55 // pred_check_branch
          %517 = sbr.rel (%p515) target = $region80
        $region79: #{tpu_custom_call.1} parent=55 // pred_region
          %519 = dma.done [#allocation12], 512
        $region80: #{tpu_custom_call.1} parent=55 // pred_fallthru
          _
        %s520 = sand.u32 %s59, 1
        %s521 = scalar_lea.sflag [#allocation3], %s520
        %s522 = sand.u32 %s59, 1
        %s523 = smul.addr %s522, 8
        %s524 = scalar_lea.vmem [#allocation2], %s523
        %p525 = pneg %p72
        %p526 = pneg %p69
        %s527 = sand.u32 %s37, 1
        %s528 = scalar_lea.sflag [#allocation6], %s527
        %s529 = sand.u32 %s87, 1
        %s530 = smul.addr %s529, 8
        %s531 = scalar_lea.vmem [#allocation5], %s530
        %p532 = pneg %p100
        %p533 = pneg %p97
        %s534 = sand.u32 %s37, 1
        %s535 = scalar_lea.sflag [#allocation6], %s534
        %s536 = sand.u32 %s115, 1
        %s537 = smul.addr %s536, 8
        %s538 = scalar_lea.vmem [#allocation7], %s537
        %p539 = pneg %p128
        %p540 = pneg %p125
        %p541 = pneg %p149
        %p542 = pneg %p146
        %p543 = pneg %p170
        %p544 = pneg %p167
        %p545 = pneg %p191
        %p546 = pneg %p188
        %p547 = pneg %p212
        %p548 = pneg %p209
        %p549 = pneg %p233
        %p550 = pneg %p230
        %p551 = pneg %p254
        %p552 = pneg %p251
        %p553 = pneg %p282
        %p554 = pneg %p279
        %s555 = sand.u32 %s269, 1
        %s556 = scalar_lea.sflag [#allocation4], %s555
        %s557 = sand.u32 %s269, 1
        %s558 = smul.addr %s557, 8
        %s559 = scalar_lea.vmem [#allocation13], %s558
        %p560 = pneg %p310
        %p561 = pneg %p307
        %s562 = sand.u32 %s37, 1
        %s563 = scalar_lea.sflag [#allocation15], %s562
        %s564 = sand.u32 %s297, 1
        %s565 = smul.addr %s564, 8
        %s566 = scalar_lea.vmem [#allocation14], %s565
        %p567 = pneg %p338
        %p568 = pneg %p335
        %s569 = sand.u32 %s37, 1
        %s570 = scalar_lea.sflag [#allocation15], %s569
        %s571 = sand.u32 %s325, 1
        %s572 = smul.addr %s571, 8
        %s573 = scalar_lea.vmem [#allocation16], %s572
        %v574 = vld [vmem:[%s479] sm:$0xff]
        %v575 = vld [vmem:[#allocation8] sm:$0xff]
        %v576 = vld [vmem:[#allocation8 + $0x8] sm:$0xff]
        %v577 = vld [vmem:[#allocation8 + $0x10] sm:$0xff]
        %v578 = vld [vmem:[#allocation8 + $0x18] sm:$0xff]
        %v579 = vld [vmem:[%s4] sm:$0x1]
        %v581 = vperm.slane %v579, 0
        %vm583 = vcmask 261120
        %v585 = vsel %vm583, %v574, 0
        %587 = vmatpush.msra.mxu0 0.0
        %588 = vmatpush.msra.mxu0 0.0
        %589 = vmatpush.msra.mxu0 0.0
        %590 = vmatpush.msra.mxu0 0.0
        %591 = vmatpush.msra.mxu0 0.0
        %592 = vmatpush.msra.mxu0 0.0
        %593 = vmatpush.msra.mxu0 0.0
        %594 = vmatpush.msra.mxu0 0.0
        %595 = vmatpush.msra.mxu0 0.0
        %596 = vmatpush.msra.mxu0 0.0
        %597 = vmatpush.msra.mxu0 0.0
        %598 = vmatpush.msra.mxu0 0.0
        %599 = vmatpush.msra.mxu0 %v578
        %600 = vmatpush.msra.mxu0 %v577
        %601 = vmatpush.msra.mxu0 %v576
        %602 = vmatpush.msra.mxu0 %v575
        %603 = vmatmul.f32.gmra.mxu0 %v585
        %v604 = vpop.f32.mrf.mxu0
        %v605 = vadd.f32 %v581, %v604
        %606 = vdwg.mxu0
        %v607 = vld [vmem:[%s489] sm:$0xff]
        %v608 = vld [vmem:[#allocation10] sm:$0xff]
        %v609 = vld [vmem:[#allocation10 + $0x8] sm:$0xff]
        %v610 = vld [vmem:[#allocation10 + $0x10] sm:$0xff]
        %v611 = vld [vmem:[#allocation10 + $0x18] sm:$0xff]
        %v612 = vld [vmem:[%s6] sm:$0x1]
        %v614 = vperm.slane %v612, 0
        %v617 = vsel %vm583, %v607, 0
        %619 = vmatpush.msra.mxu0 0.0
        %620 = vmatpush.msra.mxu0 0.0
        %621 = vmatpush.msra.mxu0 0.0
        %622 = vmatpush.msra.mxu0 0.0
        %623 = vmatpush.msra.mxu0 0.0
        %624 = vmatpush.msra.mxu0 0.0
        %625 = vmatpush.msra.mxu0 0.0
        %626 = vmatpush.msra.mxu0 0.0
        %627 = vmatpush.msra.mxu0 0.0
        %628 = vmatpush.msra.mxu0 0.0
        %629 = vmatpush.msra.mxu0 0.0
        %630 = vmatpush.msra.mxu0 0.0
        %631 = vmatpush.msra.mxu0 %v611
        %632 = vmatpush.msra.mxu0 %v610
        %633 = vmatpush.msra.mxu0 %v609
        %634 = vmatpush.msra.mxu0 %v608
        %635 = vmatmul.f32.gmra.mxu0 %v617
        %v636 = vpop.f32.mrf.mxu0
        %v637 = vadd.f32 %v614, %v636
        %638 = vdwg.mxu0
        %v639 = vld [vmem:[%s499] sm:$0xff]
        %v640 = vld [vmem:[#allocation11] sm:$0xff]
        %v641 = vld [vmem:[#allocation11 + $0x8] sm:$0xff]
        %v642 = vld [vmem:[#allocation11 + $0x10] sm:$0xff]
        %v643 = vld [vmem:[#allocation11 + $0x18] sm:$0xff]
        %v644 = vld [vmem:[%s8] sm:$0x1]
        %v646 = vperm.slane %v644, 0
        %v649 = vsel %vm583, %v639, 0
        %651 = vmatpush.msra.mxu0 0.0
        %652 = vmatpush.msra.mxu0 0.0
        %653 = vmatpush.msra.mxu0 0.0
        %654 = vmatpush.msra.mxu0 0.0
        %655 = vmatpush.msra.mxu0 0.0
        %656 = vmatpush.msra.mxu0 0.0
        %657 = vmatpush.msra.mxu0 0.0
        %658 = vmatpush.msra.mxu0 0.0
        %659 = vmatpush.msra.mxu0 0.0
        %660 = vmatpush.msra.mxu0 0.0
        %661 = vmatpush.msra.mxu0 0.0
        %662 = vmatpush.msra.mxu0 0.0
        %663 = vmatpush.msra.mxu0 %v643
        %664 = vmatpush.msra.mxu0 %v642
        %665 = vmatpush.msra.mxu0 %v641
        %666 = vmatpush.msra.mxu0 %v640
        %667 = vmatmul.f32.gmra.mxu0 %v649
        %v668 = vpop.f32.mrf.mxu0
        %v669 = vadd.f32 %v646, %v668
        %670 = vdwg.mxu0
        %v671 = vmul.f32 %v605, 0.35355338
        %672 = vst.msk [vmem:[%s559] sm:$0xff] %vm583, %v671
        %673 = vst.msk [vmem:[%s566] sm:$0xff] %vm583, %v637
        %674 = vst.msk [vmem:[%s573] sm:$0xff] %vm583, %v669
        %s675 = sand.u32 %s269, 1
        %s676 = scalar_lea.sflag [#allocation4], %s675
        %s677 = sand.u32 %s269, 1
        %s678 = smul.addr %s677, 8
        %s679 = scalar_lea.vmem [#allocation13], %s678
        %s680 = sand.u32 %s37, 1
        %s681 = scalar_lea.sflag [#allocation15], %s680
        %s682 = sand.u32 %s297, 1
        %s683 = smul.addr %s682, 8
        %s684 = scalar_lea.vmem [#allocation14], %s683
        %s685 = sand.u32 %s37, 1
        %s686 = scalar_lea.sflag [#allocation15], %s685
        %s687 = sand.u32 %s325, 1
        %s688 = smul.addr %s687, 8
        %s689 = scalar_lea.vmem [#allocation16], %s688
        // Predicated region
        $region81: #{tpu_custom_call.1} parent=55 // pred_check
          %p690 = pneg %p279
        $region82: #{tpu_custom_call.1} parent=55 // pred_check_branch
          %692 = sbr.rel (%p690) target = $region84
        $region83: #{tpu_custom_call.1} parent=55 // pred_region
          %694 = vsyncadd %s676, 0
          %s695 = sadd.s32 %s42, %s41
          %s696 = smul.addr %s695, 8
          %s697 = scalar_lea.hbm %s9, %s696
          %s699 = sshll.u32 %s679, 4
          %s700 = int_to_ptr.vmem [resolvable:$true] %s699
          %s701 = sshll.u32 %s697, 4
          %s702 = int_to_ptr.hbm [resolvable:$true] %s701
          %704 = dma.vmem_to_hbm [thread:$0]  %s700, 128, %s702, %s676
        $region84: #{tpu_custom_call.1} parent=55 // pred_fallthru
          _
        // Predicated region
        $region85: #{tpu_custom_call.1} parent=55 // pred_check
          %p705 = pneg %p307
        $region86: #{tpu_custom_call.1} parent=55 // pred_check_branch
          %707 = sbr.rel (%p705) target = $region88
        $region87: #{tpu_custom_call.1} parent=55 // pred_region
          %709 = vsyncadd %s681, 0
          %s710 = sadd.s32 %s42, %s41
          %s711 = smul.addr %s710, 8
          %s712 = scalar_lea.hbm %s10, %s711
          %s714 = sshll.u32 %s684, 4
          %s715 = int_to_ptr.vmem [resolvable:$true] %s714
          %s716 = sshll.u32 %s712, 4
          %s717 = int_to_ptr.hbm [resolvable:$true] %s716
          %719 = dma.vmem_to_hbm [thread:$0]  %s715, 128, %s717, %s681
        $region88: #{tpu_custom_call.1} parent=55 // pred_fallthru
          _
        // Predicated region
        $region89: #{tpu_custom_call.1} parent=55 // pred_check
          %p720 = pneg %p335
        $region90: #{tpu_custom_call.1} parent=55 // pred_check_branch
          %722 = sbr.rel (%p720) target = $region92
        $region91: #{tpu_custom_call.1} parent=55 // pred_region
          %724 = vsyncadd %s686, 0
          %s725 = sadd.s32 %s42, %s41
          %s726 = smul.addr %s725, 8
          %s727 = scalar_lea.hbm %s11, %s726
          %s729 = sshll.u32 %s689, 4
          %s730 = int_to_ptr.vmem [resolvable:$true] %s729
          %s731 = sshll.u32 %s727, 4
          %s732 = int_to_ptr.hbm [resolvable:$true] %s731
          %734 = dma.vmem_to_hbm [thread:$0]  %s730, 128, %s732, %s686
        $region92: #{tpu_custom_call.1} parent=55 // pred_fallthru
          _
      $region56: #{tpu_custom_call.1} parent=5 // pred_fallthru
        _
      %p735 = scmp.le.s32.totalorder 2, %s32
      // Predicated region
      $region93: #{tpu_custom_call.1} parent=5 // pred_check
        %p736 = pneg %p735
      $region94: #{tpu_custom_call.1} parent=5 // pred_check_branch
        %738 = sbr.rel (%p736) target = $region96
      $region95: #{tpu_custom_call.1} parent=5 // pred_region
        %s739 = ssub.s32 %s32, 2
        // Predicated region
        $region97: #{tpu_custom_call.1} parent=95 // pred_check
          %p740 = pneg %p285
        $region98: #{tpu_custom_call.1} parent=95 // pred_check_branch
          %742 = sbr.rel (%p740) target = $region100
        $region99: #{tpu_custom_call.1} parent=95 // pred_region
          %s743 = sand.u32 %s270, 1
          %s744 = scalar_lea.sflag [#allocation4], %s743
          %s745 = sand.u32 %s270, 1
          %s746 = smul.addr %s745, 8
          %s747 = scalar_lea.vmem [#allocation13], %s746
          %749 = dma.done %s744, 128
        $region100: #{tpu_custom_call.1} parent=95 // pred_fallthru
          _
        // Predicated region
        $region101: #{tpu_custom_call.1} parent=95 // pred_check
          %p750 = pneg %p313
        $region102: #{tpu_custom_call.1} parent=95 // pred_check_branch
          %752 = sbr.rel (%p750) target = $region104
        $region103: #{tpu_custom_call.1} parent=95 // pred_region
          %s753 = sand.u32 %s38, 1
          %s754 = scalar_lea.sflag [#allocation15], %s753
          %s755 = sand.u32 %s298, 1
          %s756 = smul.addr %s755, 8
          %s757 = scalar_lea.vmem [#allocation14], %s756
          %759 = dma.done %s754, 128
        $region104: #{tpu_custom_call.1} parent=95 // pred_fallthru
          _
        // Predicated region
        $region105: #{tpu_custom_call.1} parent=95 // pred_check
          %p760 = pneg %p341
        $region106: #{tpu_custom_call.1} parent=95 // pred_check_branch
          %762 = sbr.rel (%p760) target = $region108
        $region107: #{tpu_custom_call.1} parent=95 // pred_region
          %s763 = sand.u32 %s38, 1
          %s764 = scalar_lea.sflag [#allocation15], %s763
          %s765 = sand.u32 %s326, 1
          %s766 = smul.addr %s765, 8
          %s767 = scalar_lea.vmem [#allocation16], %s766
          %769 = dma.done %s764, 128
        $region108: #{tpu_custom_call.1} parent=95 // pred_fallthru
          _
      $region96: #{tpu_custom_call.1} parent=5 // pred_fallthru
        _
    $region6: #{tpu_custom_call.1} parent=1 // loop_footer
      %s36 = sadd.s32 1, %s32
    $region7: #{tpu_custom_call.1} parent=1 // loop_footer_branch
      %31 = sbr.rel target = $region3
    $region8: #{tpu_custom_call.1} parent=1 // loop_exit
      _
    %770 = vsyncpa [#allocation3], 1
    %s771 = scalar_lea.sflag [#allocation3], 1
    %772 = vsyncpa %s771, 1
    %773 = vsyncpa [#allocation6], 1
    %s774 = scalar_lea.sflag [#allocation6], 1
    %775 = vsyncpa %s774, 1
    %776 = vsyncpa [#allocation9], 1
    %777 = vsyncpa [#allocation12], 1
    %778 = vsyncpa [#allocation4], 1
    %s779 = scalar_lea.sflag [#allocation4], 1
    %780 = vsyncpa %s779, 1
    %781 = vsyncpa [#allocation15], 1
    %s782 = scalar_lea.sflag [#allocation15], 1
    %783 = vsyncpa %s782, 1

</llo_original>
